<compile_context>
chip_gen: v5e
topology: v5e:2x2
jax: 0.10.0
libtpu: 0.0.40
codegen_flags: <defaults>
</compile_context>

<pallas_src>
import functools

import jax
import jax.numpy as jnp
import numpy as np
from jax.experimental import pallas as pl
from jax.experimental.pallas import tpu as pltpu

# Keep every dot (kernel + reference) at full f32 precision so the Pallas
# output and the pure-JAX reference agree to f32 rounding instead of
# bf16-MXU-truncation noise (the cause of the previous tolerance failure).
jax.config.update("jax_default_matmul_precision", "highest")


def memn2n_kernel(q_ref, x_ref, w_ref, u_ref, *, hops, hidden):
    """One batch element per grid step (grid axis = batch, 'parallel').

    q_ref : (1, L, E)          this batch element's question
    x_ref : (M, 1, L, E)       this batch element's memory inputs
    w_ref : (E, (hops+2)*H)    [ B | A_1 | A_2=C_1 | ... | A_k=C_{k-1} | C_k ]
    u_ref : (1, 1, H)          controller state output (batch, 1, hidden)
    """
    H = hidden
    M = x_ref.shape[0]

    # Commute the L-reduction with the matmuls: sum_L(x @ W) == (sum_L x) @ W.
    qs = q_ref[...].sum(axis=1)                 # (1, E)
    xs = x_ref[...].sum(axis=(1, 2))            # (M, E)
    rows = jnp.concatenate([qs, xs], axis=0)    # (1 + M, E)

    # One fused MXU push produces u_0 and every hop's m/c.  Column blocks:
    # block 0 = B, block i = A_i (= C_{i-1}), block hops+1 = C_k.
    r = jnp.dot(rows, w_ref[...], preferred_element_type=jnp.float32)

    u = r[0:1, 0:H]               # (1, H)  u_0 = (sum_L q) @ B
    m = r[1:, H:2 * H]            # (M, H)  m of hop 1 = (sum_L x) @ A_1
    for i in range(1, hops + 1):                   # static, unrolled hop loop
        c = r[1:, (i + 1) * H:(i + 2) * H]         # (M, H)  c of hop i

        # p = softmax_j(u . m_j); logits laid out (1, M): memory axis on lanes.
        logits = jax.lax.dot_general(
            u, m, dimension_numbers=(((1,), (1,)), ((), ())),
            preferred_element_type=jnp.float32)    # (1, M)  == u @ m^T
        logits = logits - jnp.max(logits, axis=-1, keepdims=True)
        e = jnp.exp(logits)
        p = e / jnp.sum(e, axis=-1, keepdims=True)  # exact divide (no approx rcp)

        # o = sum_j p_j * c_j ;  u <- u + o
        u = u + jnp.dot(p, c, preferred_element_type=jnp.float32)   # (1, H)
        m = c                                      # adjacent tying: m_{i+1} = c_i

    u_ref[0] = u


def memn2n_forward(questions, inputs, B_param, A_1, weights, C_k, hops):
    """Adjacent-tied MemN2N forward. Returns (batch, 1, hidden)."""
    Bsz, L, E = questions.shape
    M = inputs.shape[0]
    H = B_param.shape[1]

    # Embedding chain concatenated along the (lane) hidden axis: (E, (hops+2)*H).
    W_all = jnp.concatenate([B_param, A_1] + list(weights) + [C_k], axis=1)

    cost = pl.CostEstimate(
        flops=Bsz * (2 * (1 + M) * E * (hops + 2) * H + hops * 4 * M * H),
        transcendentals=Bsz * hops * M,
        bytes_accessed=4 * (questions.size + inputs.size + W_all.size + Bsz * H),
    )

    kernel = functools.partial(memn2n_kernel, hops=hops, hidden=H)
    return pl.pallas_call(
        kernel,
        out_shape=jax.ShapeDtypeStruct((Bsz, 1, H), jnp.float32),
        grid=(Bsz,),
        in_specs=[
            pl.BlockSpec((1, L, E), lambda b: (b, 0, 0)),
            pl.BlockSpec((M, 1, L, E), lambda b: (0, b, 0, 0)),
            pl.BlockSpec((E, (hops + 2) * H), lambda b: (0, 0)),
        ],
        out_specs=pl.BlockSpec((1, 1, H), lambda b: (b, 0, 0)),
        compiler_params=pltpu.CompilerParams(
            dimension_semantics=("parallel",)),
        cost_estimate=cost,
    )(questions, inputs, W_all)

# TODO(synk): at scaled shapes, cast q/x/W_all to bfloat16 (keep f32
# accumulation) to halve the dominant x DMA stream, tile the memory axis M
# ("arbitrary" grid axis + online softmax, pl.Buffered on the x spec), and
# re-derive vmem_limit_bytes for the 64 MiB v7x VMEM; unnecessary at these
# toy sizes where the kernel is launch/latency bound.


def memn2n_reference(questions, inputs, B_param, A_1, weights, C_k, hops):
    """Pure-JAX reference mirroring the PyTorch forward literally."""
    u = jnp.einsum('ble,eh->bh', questions, B_param)
    for i in range(1, hops + 1):
        A = A_1 if i == 1 else weights[i - 2]
        C = C_k if i == hops else weights[i - 1]
        m = jnp.einsum('mble,eh->mbh', inputs, A)
        c = jnp.einsum('mble,eh->mbh', inputs, C)
        logits = jnp.einsum('bh,mbh->bm', u, m)
        p = jax.nn.softmax(logits, axis=-1)
        o = jnp.einsum('bm,mbh->bh', p, c)
        u = u + o
    return u[:, None, :]


if __name__ == "__main__":
    # Small shapes consistent with the module's __init__/forward.
    mem_size, hidden_size, emb_size = 4, 32, 32
    max_length, batch_size, hops = 8, 2, 3

    key = jax.random.PRNGKey(0)
    keys = jax.random.split(key, 6)

    # Deterministic parameter init (the module leaves tensors uninitialized).
    A_1 = 0.1 * jax.random.normal(keys[0], (emb_size, hidden_size), jnp.float32)
    C_k = 0.1 * jax.random.normal(keys[1], (emb_size, hidden_size), jnp.float32)
    B_p = 0.1 * jax.random.normal(keys[2], (emb_size, hidden_size), jnp.float32)
    weights = [
        0.1 * jax.random.normal(k, (emb_size, hidden_size), jnp.float32)
        for k in jax.random.split(keys[3], hops - 1)
    ]

    questions = 0.5 * jax.random.normal(
        keys[4], (batch_size, max_length, emb_size), jnp.float32)
    inputs = 0.5 * jax.random.normal(
        keys[5], (mem_size, batch_size, max_length, emb_size), jnp.float32)

    u_out = memn2n_forward(questions, inputs, B_p, A_1, weights, C_k, hops)
    u_out = jax.block_until_ready(u_out)

    u_ref = memn2n_reference(questions, inputs, B_p, A_1, weights, C_k, hops)
    # Exact softmax + "highest" matmul precision: only f32 reassociation noise
    # (L-sum commute, fused wide matmul) separates kernel and reference.
    np.testing.assert_allclose(np.asarray(u_out), np.asarray(u_ref),
                               rtol=2e-3, atol=2e-4)
    assert u_out.shape == (batch_size, 1, hidden_size)
    print("KERNEL_OK")
</pallas_src>

<mosaic_0001>
module attributes {stable_mosaic.version = 11 : i64} {
  func.func @memn2n_kernel(%arg0: i32, %arg1: memref<1x8x32xf32, #tpu.memory_space<vmem>>, %arg2: memref<4x1x8x32xf32, #tpu.memory_space<vmem>>, %arg3: memref<32x160xf32, #tpu.memory_space<vmem>>, %arg4: memref<1x1x32xf32, #tpu.memory_space<vmem>>) attributes {dimension_semantics = [#tpu.dimension_semantics<parallel>], iteration_bounds = array<i64: 2>, scalar_prefetch = 0 : i64, scratch_operands = 0 : i64, tpu.core_type = #tpu.core_type<tc>, window_params = [{transform_indices = @transform_0, window_bounds = array<i64: 1, 8, 32>}, {transform_indices = @transform_1, window_bounds = array<i64: 4, 1, 8, 32>}, {pipeline_mode = #tpu.pipeline_mode<synchronous>, transform_indices = @transform_2, window_bounds = array<i64: 32, 160>}, {transform_indices = @transform_3, window_bounds = array<i64: 1, 1, 32>}]} {
    %c0 = arith.constant 0 : index
    %c0_0 = arith.constant 0 : index
    %c0_1 = arith.constant 0 : index
    %0 = vector.load %arg1[%c0, %c0_0, %c0_1] : memref<1x8x32xf32, #tpu.memory_space<vmem>>, vector<1x8x32xf32>
    %cst = arith.constant dense<0.000000e+00> : vector<1x32xf32>
    %1 = vector.multi_reduction <add>, %0, %cst [1] : vector<1x8x32xf32> to vector<1x32xf32>
    %c0_2 = arith.constant 0 : index
    %c0_3 = arith.constant 0 : index
    %c0_4 = arith.constant 0 : index
    %c0_5 = arith.constant 0 : index
    %2 = vector.load %arg2[%c0_2, %c0_3, %c0_4, %c0_5] : memref<4x1x8x32xf32, #tpu.memory_space<vmem>>, vector<4x1x8x32xf32>
    %cst_6 = arith.constant dense<0.000000e+00> : vector<4x32xf32>
    %3 = vector.multi_reduction <add>, %2, %cst_6 [1, 2] : vector<4x1x8x32xf32> to vector<4x32xf32>
    %4 = tpu.concatenate %1, %3 in 0 : vector<1x32xf32>, vector<4x32xf32> -> vector<5x32xf32>
    %c0_7 = arith.constant 0 : index
    %c0_8 = arith.constant 0 : index
    %5 = vector.load %arg3[%c0_7, %c0_8] : memref<32x160xf32, #tpu.memory_space<vmem>>, vector<32x160xf32>
    %cst_9 = arith.constant dense<0.000000e+00> : vector<5x160xf32>
    %6 = tpu.matmul %4, %5, %cst_9 {dimension_numbers = #tpu.dot_dimension_numbers<[1], [0], [0], [1], [0, 0, 1, 1], [], []>, precision = #tpu.contract_precision<fp32>} : vector<5x32xf32>, vector<32x160xf32>, vector<5x160xf32> -> vector<5x160xf32>
    %7 = vector.extract_strided_slice %6 {offsets = [0, 0], sizes = [1, 32], strides = [1, 1]} : vector<5x160xf32> to vector<1x32xf32>
    %8 = vector.extract_strided_slice %6 {offsets = [1, 32], sizes = [4, 32], strides = [1, 1]} : vector<5x160xf32> to vector<4x32xf32>
    %9 = vector.extract_strided_slice %6 {offsets = [1, 64], sizes = [4, 32], strides = [1, 1]} : vector<5x160xf32> to vector<4x32xf32>
    %cst_10 = arith.constant dense<0.000000e+00> : vector<1x4xf32>
    %10 = tpu.matmul %7, %8, %cst_10 {dimension_numbers = #tpu.dot_dimension_numbers<[1], [1], [0], [0], [0, 0, 1, 0], [], []>, precision = #tpu.contract_precision<fp32>} : vector<1x32xf32>, vector<4x32xf32>, vector<1x4xf32> -> vector<1x4xf32>
    %cst_11 = arith.constant dense<0xFF800000> : vector<1xf32>
    %11 = vector.multi_reduction <maximumf>, %10, %cst_11 [1] : vector<1x4xf32> to vector<1xf32>
    %12 = vector.shape_cast %11 : vector<1xf32> to vector<1x1xf32>
    %13 = vector.broadcast %12 : vector<1x1xf32> to vector<1x4xf32>
    %14 = arith.subf %10, %13 : vector<1x4xf32>
    %15 = math.exp %14 : vector<1x4xf32>
    %cst_12 = arith.constant dense<0.000000e+00> : vector<1xf32>
    %16 = vector.multi_reduction <add>, %15, %cst_12 [1] : vector<1x4xf32> to vector<1xf32>
    %17 = vector.shape_cast %16 : vector<1xf32> to vector<1x1xf32>
    %18 = vector.broadcast %17 : vector<1x1xf32> to vector<1x4xf32>
    %19 = arith.divf %15, %18 : vector<1x4xf32>
    %cst_13 = arith.constant dense<0.000000e+00> : vector<1x32xf32>
    %20 = tpu.matmul %19, %9, %cst_13 {dimension_numbers = #tpu.dot_dimension_numbers<[1], [0], [0], [1], [0, 0, 1, 1], [], []>, precision = #tpu.contract_precision<fp32>} : vector<1x4xf32>, vector<4x32xf32>, vector<1x32xf32> -> vector<1x32xf32>
    %21 = arith.addf %7, %20 : vector<1x32xf32>
    %22 = vector.extract_strided_slice %6 {offsets = [1, 96], sizes = [4, 32], strides = [1, 1]} : vector<5x160xf32> to vector<4x32xf32>
    %cst_14 = arith.constant dense<0.000000e+00> : vector<1x4xf32>
    %23 = tpu.matmul %21, %9, %cst_14 {dimension_numbers = #tpu.dot_dimension_numbers<[1], [1], [0], [0], [0, 0, 1, 0], [], []>, precision = #tpu.contract_precision<fp32>} : vector<1x32xf32>, vector<4x32xf32>, vector<1x4xf32> -> vector<1x4xf32>
    %cst_15 = arith.constant dense<0xFF800000> : vector<1xf32>
    %24 = vector.multi_reduction <maximumf>, %23, %cst_15 [1] : vector<1x4xf32> to vector<1xf32>
    %25 = vector.shape_cast %24 : vector<1xf32> to vector<1x1xf32>
    %26 = vector.broadcast %25 : vector<1x1xf32> to vector<1x4xf32>
    %27 = arith.subf %23, %26 : vector<1x4xf32>
    %28 = math.exp %27 : vector<1x4xf32>
    %cst_16 = arith.constant dense<0.000000e+00> : vector<1xf32>
    %29 = vector.multi_reduction <add>, %28, %cst_16 [1] : vector<1x4xf32> to vector<1xf32>
    %30 = vector.shape_cast %29 : vector<1xf32> to vector<1x1xf32>
    %31 = vector.broadcast %30 : vector<1x1xf32> to vector<1x4xf32>
    %32 = arith.divf %28, %31 : vector<1x4xf32>
    %cst_17 = arith.constant dense<0.000000e+00> : vector<1x32xf32>
    %33 = tpu.matmul %32, %22, %cst_17 {dimension_numbers = #tpu.dot_dimension_numbers<[1], [0], [0], [1], [0, 0, 1, 1], [], []>, precision = #tpu.contract_precision<fp32>} : vector<1x4xf32>, vector<4x32xf32>, vector<1x32xf32> -> vector<1x32xf32>
    %34 = arith.addf %21, %33 : vector<1x32xf32>
    %35 = vector.extract_strided_slice %6 {offsets = [1, 128], sizes = [4, 32], strides = [1, 1]} : vector<5x160xf32> to vector<4x32xf32>
    %cst_18 = arith.constant dense<0.000000e+00> : vector<1x4xf32>
    %36 = tpu.matmul %34, %22, %cst_18 {dimension_numbers = #tpu.dot_dimension_numbers<[1], [1], [0], [0], [0, 0, 1, 0], [], []>, precision = #tpu.contract_precision<fp32>} : vector<1x32xf32>, vector<4x32xf32>, vector<1x4xf32> -> vector<1x4xf32>
    %cst_19 = arith.constant dense<0xFF800000> : vector<1xf32>
    %37 = vector.multi_reduction <maximumf>, %36, %cst_19 [1] : vector<1x4xf32> to vector<1xf32>
    %38 = vector.shape_cast %37 : vector<1xf32> to vector<1x1xf32>
    %39 = vector.broadcast %38 : vector<1x1xf32> to vector<1x4xf32>
    %40 = arith.subf %36, %39 : vector<1x4xf32>
    %41 = math.exp %40 : vector<1x4xf32>
    %cst_20 = arith.constant dense<0.000000e+00> : vector<1xf32>
    %42 = vector.multi_reduction <add>, %41, %cst_20 [1] : vector<1x4xf32> to vector<1xf32>
    %43 = vector.shape_cast %42 : vector<1xf32> to vector<1x1xf32>
    %44 = vector.broadcast %43 : vector<1x1xf32> to vector<1x4xf32>
    %45 = arith.divf %41, %44 : vector<1x4xf32>
    %cst_21 = arith.constant dense<0.000000e+00> : vector<1x32xf32>
    %46 = tpu.matmul %45, %35, %cst_21 {dimension_numbers = #tpu.dot_dimension_numbers<[1], [0], [0], [1], [0, 0, 1, 1], [], []>, precision = #tpu.contract_precision<fp32>} : vector<1x4xf32>, vector<4x32xf32>, vector<1x32xf32> -> vector<1x32xf32>
    %47 = arith.addf %34, %46 : vector<1x32xf32>
    %c0_22 = arith.constant 0 : index
    %c0_23 = arith.constant 0 : index
    %c0_24 = arith.constant 0 : index
    %48 = vector.load %arg4[%c0_22, %c0_23, %c0_24] : memref<1x1x32xf32, #tpu.memory_space<vmem>>, vector<1x1x32xf32>
    %49 = vector.shape_cast %48 : vector<1x1x32xf32> to vector<1x32xf32>
    %50 = vector.shape_cast %47 : vector<1x32xf32> to vector<1x1x32xf32>
    tpu.vector_store %arg4[%c0_22, %c0_23, %c0_24], %50 {strides = array<i32>} : memref<1x1x32xf32, #tpu.memory_space<vmem>>, vector<1x1x32xf32>,
    return
  }
  func.func @transform_0(%arg0: i32) -> (i32, i32, i32) {
    %c0_i32 = arith.constant 0 : i32
    %c0_i32_0 = arith.constant 0 : i32
    %c0_i32_1 = arith.constant 0 : i32
    return %arg0, %c0_i32, %c0_i32_0 : i32, i32, i32
  }
  func.func @transform_1(%arg0: i32) -> (i32, i32, i32, i32) {
    %c0_i32 = arith.constant 0 : i32
    %c0_i32_0 = arith.constant 0 : i32
    %c0_i32_1 = arith.constant 0 : i32
    %c0_i32_2 = arith.constant 0 : i32
    return %c0_i32, %arg0, %c0_i32_0, %c0_i32_1 : i32, i32, i32, i32
  }
  func.func @transform_2(%arg0: i32) -> (i32, i32) {
    %c0_i32 = arith.constant 0 : i32
    %c0_i32_0 = arith.constant 0 : i32
    %c0_i32_1 = arith.constant 0 : i32
    return %c0_i32, %c0_i32_0 : i32, i32
  }
  func.func @transform_3(%arg0: i32) -> (i32, i32, i32) {
    %c0_i32 = arith.constant 0 : i32
    %c0_i32_0 = arith.constant 0 : i32
    %c0_i32_1 = arith.constant 0 : i32
    return %arg0, %c0_i32, %c0_i32_0 : i32, i32, i32
  }
}

</mosaic_0001>

<llo_original>
// kernel: tpu_custom_call.1
$region0: #{tpu_custom_call.1}
  #allocation0 [shape = 'u32[]', space=smem, size = 0x4, offset = 0x4, fixed_abs, tag = 'smem constant byte address 0x4 - core index']
  #allocation1 [shape = 'u32[72,128]{1,0:T(1,128)}', space=vmem, size = 0x9000, scoped, tag = 'internal scratch']
  %s0 = inlined_call_operand.hbm [shape: f32[2,8,32], index: 0, kind: input, shape index: {}]
  %s1 = inlined_call_operand.hbm [shape: f32[4,2,8,32], index: 1, kind: input, shape index: {}]
  %s2 = inlined_call_operand.hbm [shape: f32[32,160], index: 2, kind: input, shape index: {}]
  %s3 = inlined_call_operand.hbm [shape: f32[2,1,32], index: 3, kind: output, shape index: {}]
  %s4 = sld [smem:[#allocation0]]
  $region57: #{tpu_custom_call.1} parent=0
    _
  %s6 = ssub.s32 1, %s4
  %s7 = scalar_select 0, %s6, %s4
  $region1: #{tpu_custom_call.1} parent=0
    #allocation2 [shape = 'u8[8192]{0}', space=vmem, size = 0x2000, scoped, tag = 'input window, operand 0']
    #allocation3 [shape = 's32[2]{0}', space=sflag, size = 0x8, scoped, tag = 'scoped memory for tpu_custom_call.1']
    #allocation4 [shape = 's32[2]{0}', space=sflag, size = 0x8, scoped, tag = 'scoped memory for tpu_custom_call.1']
    #allocation5 [shape = 'u8[32768]{0}', space=vmem, size = 0x8000, scoped, tag = 'input window, operand 1']
    #allocation6 [shape = 's32[2]{0}', space=sflag, size = 0x8, scoped, tag = 'scoped memory for tpu_custom_call.1']
    #allocation7 [shape = 'u8[32768]{0}', space=vmem, size = 0x8000, scoped, tag = 'input window, operand 2, single buffered']
    #allocation8 [shape = 'u8[1024]{0}', space=vmem, size = 0x400, scoped, tag = 'output window, operand 0']
    %8 = vsyncpa [#allocation3], 0
    %s9 = scalar_lea.sflag [#allocation3], 1
    %10 = vsyncpa %s9, 0
    %11 = vsyncpa [#allocation6], 0
    %s12 = scalar_lea.sflag [#allocation6], 1
    %13 = vsyncpa %s12, 0
    %14 = vsyncpa [#allocation4], 0
    %s15 = scalar_lea.sflag [#allocation4], 1
    %16 = vsyncpa %s15, 0
    loop: start=0, step=1, limit=4
    $region2: #{tpu_custom_call.1} parent=1 // loop_pre_header
      _
    $region3: #{tpu_custom_call.1} parent=1 // loop_header
      %s18 = sphi 0, %s22
      %p19 = scmp.ge.s32.totalorder %s18, 4
      %s28 = sphi 0, %s30
      %s31 = sphi 0, %s28
      %s32 = sphi 0, %s31
      %s48 = sphi 0, %s32
      %s54 = sphi 0, %s56
      %s57 = sphi 0, %s54
      %s58 = sphi 0, %s57
      %s74 = sphi 0, %s58
      %s78 = sphi 0, %s78
      %s80 = sphi 0, %s78
      %s81 = sphi 0, %s80
      %s95 = sphi 0, %s81
      %s101 = sphi 0, %s103
      %s104 = sphi 0, %s101
      %s105 = sphi 0, %s104
      %s121 = sphi 0, %s105
    $region4: #{tpu_custom_call.1} parent=1 // loop_header_branch
      %21 = sbr.rel (%p19) target = $region8
    $region5: #{tpu_custom_call.1} parent=1 // loop_body
      %s23 = ssub.s32 %s18, 1
      %s24 = ssub.s32 %s18, 2
      %s25 = sadd.s32 %s18, 1
      %s26 = ssub.s32 %s18, %s25
      %p27 = scmp.eq.s32.totalorder %s26, 0
      %s29 = sadd.s32 %s28, 1
      %s30 = scalar_select %p27, %s28, %s29
      %p33 = pneg %p27
      %p34 = scmp.eq.s32.totalorder %s18, 1
      %p35 = por %p33, %p34
      %p36 = scmp.ne.s32.totalorder %s28, %s31
      %p37 = scmp.eq.s32.totalorder %s18, 0
      %p38 = por %p36, %p37
      %p39 = scmp.ne.s32.totalorder %s28, %s31
      %p40 = scmp.eq.s32.totalorder %s23, 1
      %p41 = por %p39, %p40
      %p42 = scmp.ne.s32.totalorder %s31, %s32
      %p43 = scmp.eq.s32.totalorder %s23, 0
      %p44 = por %p42, %p43
      %p45 = scmp.ne.s32.totalorder %s31, %s32
      %p46 = scmp.eq.s32.totalorder %s24, 1
      %p47 = por %p45, %p46
      %p49 = scmp.ne.s32.totalorder %s32, %s48
      %p50 = scmp.eq.s32.totalorder %s24, 0
      %p51 = por %p49, %p50
      %s52 = ssub.s32 %s18, %s25
      %p53 = scmp.eq.s32.totalorder %s52, 0
      %s55 = sadd.s32 %s54, 1
      %s56 = scalar_select %p53, %s54, %s55
      %p59 = pneg %p53
      %p60 = scmp.eq.s32.totalorder %s18, 1
      %p61 = por %p59, %p60
      %p62 = scmp.ne.s32.totalorder %s54, %s57
      %p63 = scmp.eq.s32.totalorder %s18, 0
      %p64 = por %p62, %p63
      %p65 = scmp.ne.s32.totalorder %s54, %s57
      %p66 = scmp.eq.s32.totalorder %s23, 1
      %p67 = por %p65, %p66
      %p68 = scmp.ne.s32.totalorder %s57, %s58
      %p69 = scmp.eq.s32.totalorder %s23, 0
      %p70 = por %p68, %p69
      %p71 = scmp.ne.s32.totalorder %s57, %s58
      %p72 = scmp.eq.s32.totalorder %s24, 1
      %p73 = por %p71, %p72
      %p75 = scmp.ne.s32.totalorder %s58, %s74
      %p76 = scmp.eq.s32.totalorder %s24, 0
      %p77 = por %p75, %p76
      %s79 = sadd.s32 %s78, 1
      %p82 = scmp.eq.s32.totalorder %s18, 1
      %p83 = scmp.ne.s32.totalorder %s78, %s80
      %p84 = scmp.eq.s32.totalorder %s18, 0
      %p85 = por %p83, %p84
      %p86 = scmp.ne.s32.totalorder %s78, %s80
      %p87 = scmp.eq.s32.totalorder %s23, 1
      %p88 = por %p86, %p87
      %p89 = scmp.ne.s32.totalorder %s80, %s81
      %p90 = scmp.eq.s32.totalorder %s23, 0
      %p91 = por %p89, %p90
      %p92 = scmp.ne.s32.totalorder %s80, %s81
      %p93 = scmp.eq.s32.totalorder %s24, 1
      %p94 = por %p92, %p93
      %p96 = scmp.ne.s32.totalorder %s81, %s95
      %p97 = scmp.eq.s32.totalorder %s24, 0
      %p98 = por %p96, %p97
      %s99 = ssub.s32 %s18, %s25
      %p100 = scmp.eq.s32.totalorder %s99, 0
      %s102 = sadd.s32 %s101, 1
      %s103 = scalar_select %p100, %s101, %s102
      %p106 = pneg %p100
      %p107 = scmp.eq.s32.totalorder %s18, 1
      %p108 = por %p106, %p107
      %p109 = scmp.ne.s32.totalorder %s101, %s104
      %p110 = scmp.eq.s32.totalorder %s18, 0
      %p111 = por %p109, %p110
      %p112 = scmp.ne.s32.totalorder %s101, %s104
      %p113 = scmp.eq.s32.totalorder %s23, 1
      %p114 = por %p112, %p113
      %p115 = scmp.ne.s32.totalorder %s104, %s105
      %p116 = scmp.eq.s32.totalorder %s23, 0
      %p117 = por %p115, %p116
      %p118 = scmp.ne.s32.totalorder %s104, %s105
      %p119 = scmp.eq.s32.totalorder %s24, 1
      %p120 = por %p118, %p119
      %p122 = scmp.ne.s32.totalorder %s105, %s121
      %p123 = scmp.eq.s32.totalorder %s24, 0
      %p124 = por %p122, %p123
      %p125 = scmp.le.s32.totalorder 1, %s18
      %p126 = scmp.lt.s32.totalorder %s18, 3
      %p127 = pnand %p125, %p126
      %p128 = pneg %p127
      // Predicated region
      $region9: #{tpu_custom_call.1} parent=5 // pred_check
        _
      $region10: #{tpu_custom_call.1} parent=5 // pred_check_branch
        %130 = sbr.rel (%p127) target = $region12
      $region11: #{tpu_custom_call.1} parent=5 // pred_region
        %s131 = ssub.s32 %s18, 1
        // Predicated region
        $region13: #{tpu_custom_call.1} parent=11 // pred_check
          %p132 = pneg %p91
        $region14: #{tpu_custom_call.1} parent=11 // pred_check_branch
          %134 = sbr.rel (%p132) target = $region16
        $region15: #{tpu_custom_call.1} parent=11 // pred_region
          %136 = vsyncadd [#allocation6], 0
          %s137 = sshll.u32 %s2, 4
          %s138 = int_to_ptr.hbm [resolvable:$true] %s137
          %s139 = sshll.u32 [#allocation7], 4
          %s140 = int_to_ptr.vmem [resolvable:$true] %s139
          %145 = dma.hbm_to_vmem [thread:$0]  %s138, 1024, %s140, [#allocation6], 256, 256, 16
        $region16: #{tpu_custom_call.1} parent=11 // pred_fallthru
          _
      $region12: #{tpu_custom_call.1} parent=5 // pred_fallthru
        _
      %p146 = scmp.lt.s32.totalorder %s18, 2
      // Predicated region
      $region17: #{tpu_custom_call.1} parent=5 // pred_check
        %p147 = pneg %p146
      $region18: #{tpu_custom_call.1} parent=5 // pred_check_branch
        %149 = sbr.rel (%p147) target = $region20
      $region19: #{tpu_custom_call.1} parent=5 // pred_region
        // Predicated region
        $region21: #{tpu_custom_call.1} parent=19 // pred_check
          %p150 = pneg %p38
        $region22: #{tpu_custom_call.1} parent=19 // pred_check_branch
          %152 = sbr.rel (%p150) target = $region24
        $region23: #{tpu_custom_call.1} parent=19 // pred_region
          %s153 = sand.u32 %s28, 1
          %s154 = scalar_lea.sflag [#allocation3], %s153
          %s155 = sand.u32 %s28, 1
          %s156 = smul.addr %s155, 8
          %s157 = scalar_lea.vmem [#allocation2], %s156
          %159 = vsyncadd %s154, 0
          %s160 = smul.addr %s18, 8
          %s161 = scalar_lea.hbm %s0, %s160
          %s163 = sshll.u32 %s161, 4
          %s164 = int_to_ptr.hbm [resolvable:$true] %s163
          %s165 = sshll.u32 %s157, 4
          %s166 = int_to_ptr.vmem [resolvable:$true] %s165
          %168 = dma.hbm_to_vmem [thread:$0]  %s164, 128, %s166, %s154
        $region24: #{tpu_custom_call.1} parent=19 // pred_fallthru
          _
        // Predicated region
        $region25: #{tpu_custom_call.1} parent=19 // pred_check
          %p169 = pneg %p64
        $region26: #{tpu_custom_call.1} parent=19 // pred_check_branch
          %171 = sbr.rel (%p169) target = $region28
        $region27: #{tpu_custom_call.1} parent=19 // pred_region
          %s172 = sand.u32 %s18, 1
          %s173 = scalar_lea.sflag [#allocation6], %s172
          %s174 = sand.u32 %s54, 1
          %s175 = smul.addr %s174, 32
          %s176 = scalar_lea.vmem [#allocation5], %s175
          %178 = vsyncadd %s173, 0
          %s179 = smul.addr %s18, 8
          %s180 = scalar_lea.hbm %s1, %s179
          %s181 = sshll.u32 %s180, 4
          %s182 = int_to_ptr.hbm [resolvable:$true] %s181
          %s183 = sshll.u32 %s176, 4
          %s184 = int_to_ptr.vmem [resolvable:$true] %s183
          %189 = dma.hbm_to_vmem [thread:$0]  %s182, 512, %s184, %s173, 256, 128, 8
        $region28: #{tpu_custom_call.1} parent=19 // pred_fallthru
          _
      $region20: #{tpu_custom_call.1} parent=5 // pred_fallthru
        _
      %p190 = scmp.le.s32.totalorder 1, %s18
      %p191 = scmp.lt.s32.totalorder %s18, 3
      %p192 = pnand %p190, %p191
      %p193 = pneg %p192
      // Predicated region
      $region29: #{tpu_custom_call.1} parent=5 // pred_check
        _
      $region30: #{tpu_custom_call.1} parent=5 // pred_check_branch
        %195 = sbr.rel (%p192) target = $region32
      $region31: #{tpu_custom_call.1} parent=5 // pred_region
        %s196 = ssub.s32 %s18, 1
        %s197 = sand.u32 %s31, 1
        %s198 = scalar_lea.sflag [#allocation3], %s197
        %s199 = sand.u32 %s31, 1
        %s200 = smul.addr %s199, 8
        %s201 = scalar_lea.vmem [#allocation2], %s200
        // Predicated region
        $region33: #{tpu_custom_call.1} parent=31 // pred_check
          %p202 = pneg %p44
        $region34: #{tpu_custom_call.1} parent=31 // pred_check_branch
          %204 = sbr.rel (%p202) target = $region36
        $region35: #{tpu_custom_call.1} parent=31 // pred_region
          %206 = dma.done %s198, 128
        $region36: #{tpu_custom_call.1} parent=31 // pred_fallthru
          _
        %s207 = sand.u32 %s23, 1
        %s208 = scalar_lea.sflag [#allocation6], %s207
        %s209 = sand.u32 %s57, 1
        %s210 = smul.addr %s209, 32
        %s211 = scalar_lea.vmem [#allocation5], %s210
        // Predicated region
        $region37: #{tpu_custom_call.1} parent=31 // pred_check
          %p212 = pneg %p70
        $region38: #{tpu_custom_call.1} parent=31 // pred_check_branch
          %214 = sbr.rel (%p212) target = $region40
        $region39: #{tpu_custom_call.1} parent=31 // pred_region
          %216 = dma.done %s208, 512
        $region40: #{tpu_custom_call.1} parent=31 // pred_fallthru
          _
        // Predicated region
        $region41: #{tpu_custom_call.1} parent=31 // pred_check
          %p217 = pneg %p91
        $region42: #{tpu_custom_call.1} parent=31 // pred_check_branch
          %219 = sbr.rel (%p217) target = $region44
        $region43: #{tpu_custom_call.1} parent=31 // pred_region
          %221 = dma.done [#allocation6], 1024
        $region44: #{tpu_custom_call.1} parent=31 // pred_fallthru
          _
        %s222 = sand.u32 %s31, 1
        %s223 = scalar_lea.sflag [#allocation3], %s222
        %s224 = sand.u32 %s31, 1
        %s225 = smul.addr %s224, 8
        %s226 = scalar_lea.vmem [#allocation2], %s225
        %p227 = pneg %p44
        %p228 = pneg %p41
        %s229 = sand.u32 %s23, 1
        %s230 = scalar_lea.sflag [#allocation6], %s229
        %s231 = sand.u32 %s57, 1
        %s232 = smul.addr %s231, 32
        %s233 = scalar_lea.vmem [#allocation5], %s232
        %p234 = pneg %p70
        %p235 = pneg %p67
        %p236 = pneg %p91
        %p237 = pneg %p88
        %p238 = pneg %p117
        %p239 = pneg %p114
        %s240 = sand.u32 %s104, 1
        %s241 = scalar_lea.sflag [#allocation4], %s240
        %s242 = sand.u32 %s104, 1
        %s243 = scalar_lea.vmem [#allocation8], %s242
        %v244 = vld [vmem:[%s201] sm:$0xff]
        %vm245 = vcmask 261120
        %v246 = vsel %vm245, %v244, 0.0
        %v247 = vrot.slane %v246, 4
        %v248 = vadd.f32 %v246, %v247
        %v249 = vrot.slane %v248, 2
        %v250 = vadd.f32 %v248, %v249
        %v251 = vrot.slane %v250, 1
        %v252 = vadd.f32 %v250, %v251
        %v253 = vld [vmem:[%s211] sm:$0xff]
        %v254 = vld [vmem:[%s211 + $0x8] sm:$0xff]
        %v255 = vld [vmem:[%s211 + $0x10] sm:$0xff]
        %v256 = vld [vmem:[%s211 + $0x18] sm:$0xff]
        %v257 = vsel %vm245, %v253, 0.0
        %v258 = vrot.slane %v257, 4
        %v259 = vadd.f32 %v257, %v258
        %v260 = vrot.slane %v259, 2
        %v261 = vadd.f32 %v259, %v260
        %v262 = vrot.slane %v261, 1
        %v263 = vadd.f32 %v261, %v262
        %v264 = vsel %vm245, %v254, 0.0
        %v265 = vrot.slane %v264, 4
        %v266 = vadd.f32 %v264, %v265
        %v267 = vrot.slane %v266, 2
        %v268 = vadd.f32 %v266, %v267
        %v269 = vrot.slane %v268, 1
        %v270 = vadd.f32 %v268, %v269
        %v271 = vsel %vm245, %v255, 0.0
        %v272 = vrot.slane %v271, 4
        %v273 = vadd.f32 %v271, %v272
        %v274 = vrot.slane %v273, 2
        %v275 = vadd.f32 %v273, %v274
        %v276 = vrot.slane %v275, 1
        %v277 = vadd.f32 %v275, %v276
        %v278 = vsel %vm245, %v256, 0.0
        %v279 = vrot.slane %v278, 4
        %v280 = vadd.f32 %v278, %v279
        %v281 = vrot.slane %v280, 2
        %v282 = vadd.f32 %v280, %v281
        %v283 = vrot.slane %v282, 1
        %v284 = vadd.f32 %v282, %v283
        %vm289 = vcmask 1042434
        %v290 = vsel %vm289, %v270, %v263
        %vm291 = vcmask 1043459
        %v292 = vsel %vm291, %v277, %v290
        %vm293 = vcmask 1044484
        %v294 = vsel %vm293, %v284, %v292
        %vm296 = vcmask 1040384
        %v297 = vsel %vm296, %v252, %v294
        %v298 = vld [vmem:[#allocation7] sm:$0xff]
        %v299 = vld [vmem:[#allocation7 + $0x8] sm:$0xff]
        %v300 = vld [vmem:[#allocation7 + $0x10] sm:$0xff]
        %v301 = vld [vmem:[#allocation7 + $0x18] sm:$0xff]
        %v302 = vld [vmem:[#allocation7 + $0x20] sm:$0xff]
        %v303 = vld [vmem:[#allocation7 + $0x28] sm:$0xff]
        %v304 = vld [vmem:[#allocation7 + $0x30] sm:$0xff]
        %v305 = vld [vmem:[#allocation7 + $0x38] sm:$0xff]
        %v307 = vsel %vm245, %v297, 0
        %309 = vmatpush.msra.mxu0 0.0
        %310 = vmatpush.msra.mxu0 0.0
        %311 = vmatpush.msra.mxu0 0.0
        %312 = vmatpush.msra.mxu0 0.0
        %313 = vmatpush.msra.mxu0 0.0
        %314 = vmatpush.msra.mxu0 0.0
        %315 = vmatpush.msra.mxu0 0.0
        %316 = vmatpush.msra.mxu0 0.0
        %317 = vmatpush.msra.mxu0 0.0
        %318 = vmatpush.msra.mxu0 0.0
        %319 = vmatpush.msra.mxu0 0.0
        %320 = vmatpush.msra.mxu0 0.0
        %v321 = vand.u32 %v304, 4294901760
        %322 = vmatpush.msra.mxu0 %v321
        %v323 = vand.u32 %v302, 4294901760
        %324 = vmatpush.msra.mxu0 %v323
        %v325 = vand.u32 %v300, 4294901760
        %326 = vmatpush.msra.mxu0 %v325
        %v327 = vand.u32 %v298, 4294901760
        %328 = vmatpush.msra.mxu0 %v327
        %v329 = vand.u32 %v307, 4294901760
        %v330 = vsub.f32 %v307, %v329
        %v331 = vand.u32 %v330, 4294901760
        %v332 = vsub.f32 %v330, %v331
        %v333 = vand.u32 %v332, 4294901760
        %334 = vmatmul.f32.gmra.mxu0 %v333
        %v335 = vpop.f32.mrf.mxu0
        %v336 = vadd.f32 0.0, %v335
        %337 = vdwg.mxu0
        %338 = vmatpush.msra.mxu0 0.0
        %339 = vmatpush.msra.mxu0 0.0
        %340 = vmatpush.msra.mxu0 0.0
        %341 = vmatpush.msra.mxu0 0.0
        %342 = vmatpush.msra.mxu0 0.0
        %343 = vmatpush.msra.mxu0 0.0
        %344 = vmatpush.msra.mxu0 0.0
        %345 = vmatpush.msra.mxu0 0.0
        %346 = vmatpush.msra.mxu0 0.0
        %347 = vmatpush.msra.mxu0 0.0
        %348 = vmatpush.msra.mxu0 0.0
        %349 = vmatpush.msra.mxu0 0.0
        %v350 = vand.u32 %v304, 4294901760
        %v351 = vsub.f32 %v304, %v350
        %v352 = vand.u32 %v351, 4294901760
        %v353 = vsub.f32 %v351, %v352
        %v354 = vand.u32 %v353, 4294901760
        %355 = vmatpush.msra.mxu0 %v354
        %v356 = vand.u32 %v302, 4294901760
        %v357 = vsub.f32 %v302, %v356
        %v358 = vand.u32 %v357, 4294901760
        %v359 = vsub.f32 %v357, %v358
        %v360 = vand.u32 %v359, 4294901760
        %361 = vmatpush.msra.mxu0 %v360
        %v362 = vand.u32 %v300, 4294901760
        %v363 = vsub.f32 %v300, %v362
        %v364 = vand.u32 %v363, 4294901760
        %v365 = vsub.f32 %v363, %v364
        %v366 = vand.u32 %v365, 4294901760
        %367 = vmatpush.msra.mxu0 %v366
        %v368 = vand.u32 %v298, 4294901760
        %v369 = vsub.f32 %v298, %v368
        %v370 = vand.u32 %v369, 4294901760
        %v371 = vsub.f32 %v369, %v370
        %v372 = vand.u32 %v371, 4294901760
        %373 = vmatpush.msra.mxu0 %v372
        %v374 = vand.u32 %v307, 4294901760
        %375 = vmatmul.f32.gmra.mxu0 %v374
        %v376 = vpop.f32.mrf.mxu0
        %v377 = vadd.f32 %v336, %v376
        %378 = vdwg.mxu0
        %379 = vmatpush.msra.mxu0 0.0
        %380 = vmatpush.msra.mxu0 0.0
        %381 = vmatpush.msra.mxu0 0.0
        %382 = vmatpush.msra.mxu0 0.0
        %383 = vmatpush.msra.mxu0 0.0
        %384 = vmatpush.msra.mxu0 0.0
        %385 = vmatpush.msra.mxu0 0.0
        %386 = vmatpush.msra.mxu0 0.0
        %387 = vmatpush.msra.mxu0 0.0
        %388 = vmatpush.msra.mxu0 0.0
        %389 = vmatpush.msra.mxu0 0.0
        %390 = vmatpush.msra.mxu0 0.0
        %v391 = vand.u32 %v304, 4294901760
        %v392 = vsub.f32 %v304, %v391
        %393 = vmatpush.msra.mxu0 %v392
        %v394 = vand.u32 %v302, 4294901760
        %v395 = vsub.f32 %v302, %v394
        %396 = vmatpush.msra.mxu0 %v395
        %v397 = vand.u32 %v300, 4294901760
        %v398 = vsub.f32 %v300, %v397
        %399 = vmatpush.msra.mxu0 %v398
        %v400 = vand.u32 %v298, 4294901760
        %v401 = vsub.f32 %v298, %v400
        %402 = vmatpush.msra.mxu0 %v401
        %v403 = vand.u32 %v307, 4294901760
        %v404 = vsub.f32 %v307, %v403
        %405 = vmatmul.f32.gmra.mxu0 %v404
        %v406 = vpop.f32.mrf.mxu0
        %v407 = vadd.f32 %v377, %v406
        %408 = vdwg.mxu0
        %409 = vmatpush.msra.mxu0 0.0
        %410 = vmatpush.msra.mxu0 0.0
        %411 = vmatpush.msra.mxu0 0.0
        %412 = vmatpush.msra.mxu0 0.0
        %413 = vmatpush.msra.mxu0 0.0
        %414 = vmatpush.msra.mxu0 0.0
        %415 = vmatpush.msra.mxu0 0.0
        %416 = vmatpush.msra.mxu0 0.0
        %417 = vmatpush.msra.mxu0 0.0
        %418 = vmatpush.msra.mxu0 0.0
        %419 = vmatpush.msra.mxu0 0.0
        %420 = vmatpush.msra.mxu0 0.0
        %v421 = vand.u32 %v304, 4294901760
        %422 = vmatpush.msra.mxu0 %v421
        %v423 = vand.u32 %v302, 4294901760
        %424 = vmatpush.msra.mxu0 %v423
        %v425 = vand.u32 %v300, 4294901760
        %426 = vmatpush.msra.mxu0 %v425
        %v427 = vand.u32 %v298, 4294901760
        %428 = vmatpush.msra.mxu0 %v427
        %v429 = vand.u32 %v307, 4294901760
        %v430 = vsub.f32 %v307, %v429
        %v431 = vand.u32 %v430, 4294901760
        %432 = vmatmul.f32.gmra.mxu0 %v431
        %v433 = vpop.f32.mrf.mxu0
        %v434 = vadd.f32 %v407, %v433
        %435 = vdwg.mxu0
        %436 = vmatpush.msra.mxu0 0.0
        %437 = vmatpush.msra.mxu0 0.0
        %438 = vmatpush.msra.mxu0 0.0
        %439 = vmatpush.msra.mxu0 0.0
        %440 = vmatpush.msra.mxu0 0.0
        %441 = vmatpush.msra.mxu0 0.0
        %442 = vmatpush.msra.mxu0 0.0
        %443 = vmatpush.msra.mxu0 0.0
        %444 = vmatpush.msra.mxu0 0.0
        %445 = vmatpush.msra.mxu0 0.0
        %446 = vmatpush.msra.mxu0 0.0
        %447 = vmatpush.msra.mxu0 0.0
        %v448 = vand.u32 %v304, 4294901760
        %v449 = vsub.f32 %v304, %v448
        %v450 = vand.u32 %v449, 4294901760
        %451 = vmatpush.msra.mxu0 %v450
        %v452 = vand.u32 %v302, 4294901760
        %v453 = vsub.f32 %v302, %v452
        %v454 = vand.u32 %v453, 4294901760
        %455 = vmatpush.msra.mxu0 %v454
        %v456 = vand.u32 %v300, 4294901760
        %v457 = vsub.f32 %v300, %v456
        %v458 = vand.u32 %v457, 4294901760
        %459 = vmatpush.msra.mxu0 %v458
        %v460 = vand.u32 %v298, 4294901760
        %v461 = vsub.f32 %v298, %v460
        %v462 = vand.u32 %v461, 4294901760
        %463 = vmatpush.msra.mxu0 %v462
        %v464 = vand.u32 %v307, 4294901760
        %465 = vmatmul.f32.gmra.mxu0 %v464
        %v466 = vpop.f32.mrf.mxu0
        %v467 = vadd.f32 %v434, %v466
        %468 = vdwg.mxu0
        %469 = vmatpush.msra.mxu0 0.0
        %470 = vmatpush.msra.mxu0 0.0
        %471 = vmatpush.msra.mxu0 0.0
        %472 = vmatpush.msra.mxu0 0.0
        %473 = vmatpush.msra.mxu0 0.0
        %474 = vmatpush.msra.mxu0 0.0
        %475 = vmatpush.msra.mxu0 0.0
        %476 = vmatpush.msra.mxu0 0.0
        %477 = vmatpush.msra.mxu0 0.0
        %478 = vmatpush.msra.mxu0 0.0
        %479 = vmatpush.msra.mxu0 0.0
        %480 = vmatpush.msra.mxu0 0.0
        %v481 = vand.u32 %v304, 4294901760
        %482 = vmatpush.msra.mxu0 %v481
        %v483 = vand.u32 %v302, 4294901760
        %484 = vmatpush.msra.mxu0 %v483
        %v485 = vand.u32 %v300, 4294901760
        %486 = vmatpush.msra.mxu0 %v485
        %v487 = vand.u32 %v298, 4294901760
        %488 = vmatpush.msra.mxu0 %v487
        %v489 = vand.u32 %v307, 4294901760
        %490 = vmatmul.f32.gmra.mxu0 %v489
        %v491 = vpop.f32.mrf.mxu0
        %v492 = vadd.f32 %v467, %v491
        %493 = vdwg.mxu0
        %494 = vmatpush.msra.mxu0 0.0
        %495 = vmatpush.msra.mxu0 0.0
        %496 = vmatpush.msra.mxu0 0.0
        %497 = vmatpush.msra.mxu0 0.0
        %498 = vmatpush.msra.mxu0 0.0
        %499 = vmatpush.msra.mxu0 0.0
        %500 = vmatpush.msra.mxu0 0.0
        %501 = vmatpush.msra.mxu0 0.0
        %502 = vmatpush.msra.mxu0 0.0
        %503 = vmatpush.msra.mxu0 0.0
        %504 = vmatpush.msra.mxu0 0.0
        %505 = vmatpush.msra.mxu0 0.0
        %v506 = vand.u32 %v305, 4294901760
        %507 = vmatpush.msra.mxu0 %v506
        %v508 = vand.u32 %v303, 4294901760
        %509 = vmatpush.msra.mxu0 %v508
        %v510 = vand.u32 %v301, 4294901760
        %511 = vmatpush.msra.mxu0 %v510
        %v512 = vand.u32 %v299, 4294901760
        %513 = vmatpush.msra.mxu0 %v512
        %v514 = vand.u32 %v307, 4294901760
        %v515 = vsub.f32 %v307, %v514
        %v516 = vand.u32 %v515, 4294901760
        %v517 = vsub.f32 %v515, %v516
        %v518 = vand.u32 %v517, 4294901760
        %519 = vmatmul.f32.gmra.mxu0 %v518
        %v520 = vpop.f32.mrf.mxu0
        %v521 = vadd.f32 0.0, %v520
        %522 = vdwg.mxu0
        %523 = vmatpush.msra.mxu0 0.0
        %524 = vmatpush.msra.mxu0 0.0
        %525 = vmatpush.msra.mxu0 0.0
        %526 = vmatpush.msra.mxu0 0.0
        %527 = vmatpush.msra.mxu0 0.0
        %528 = vmatpush.msra.mxu0 0.0
        %529 = vmatpush.msra.mxu0 0.0
        %530 = vmatpush.msra.mxu0 0.0
        %531 = vmatpush.msra.mxu0 0.0
        %532 = vmatpush.msra.mxu0 0.0
        %533 = vmatpush.msra.mxu0 0.0
        %534 = vmatpush.msra.mxu0 0.0
        %v535 = vand.u32 %v305, 4294901760
        %v536 = vsub.f32 %v305, %v535
        %v537 = vand.u32 %v536, 4294901760
        %v538 = vsub.f32 %v536, %v537
        %v539 = vand.u32 %v538, 4294901760
        %540 = vmatpush.msra.mxu0 %v539
        %v541 = vand.u32 %v303, 4294901760
        %v542 = vsub.f32 %v303, %v541
        %v543 = vand.u32 %v542, 4294901760
        %v544 = vsub.f32 %v542, %v543
        %v545 = vand.u32 %v544, 4294901760
        %546 = vmatpush.msra.mxu0 %v545
        %v547 = vand.u32 %v301, 4294901760
        %v548 = vsub.f32 %v301, %v547
        %v549 = vand.u32 %v548, 4294901760
        %v550 = vsub.f32 %v548, %v549
        %v551 = vand.u32 %v550, 4294901760
        %552 = vmatpush.msra.mxu0 %v551
        %v553 = vand.u32 %v299, 4294901760
        %v554 = vsub.f32 %v299, %v553
        %v555 = vand.u32 %v554, 4294901760
        %v556 = vsub.f32 %v554, %v555
        %v557 = vand.u32 %v556, 4294901760
        %558 = vmatpush.msra.mxu0 %v557
        %v559 = vand.u32 %v307, 4294901760
        %560 = vmatmul.f32.gmra.mxu0 %v559
        %v561 = vpop.f32.mrf.mxu0
        %v562 = vadd.f32 %v521, %v561
        %563 = vdwg.mxu0
        %564 = vmatpush.msra.mxu0 0.0
        %565 = vmatpush.msra.mxu0 0.0
        %566 = vmatpush.msra.mxu0 0.0
        %567 = vmatpush.msra.mxu0 0.0
        %568 = vmatpush.msra.mxu0 0.0
        %569 = vmatpush.msra.mxu0 0.0
        %570 = vmatpush.msra.mxu0 0.0
        %571 = vmatpush.msra.mxu0 0.0
        %572 = vmatpush.msra.mxu0 0.0
        %573 = vmatpush.msra.mxu0 0.0
        %574 = vmatpush.msra.mxu0 0.0
        %575 = vmatpush.msra.mxu0 0.0
        %v576 = vand.u32 %v305, 4294901760
        %v577 = vsub.f32 %v305, %v576
        %578 = vmatpush.msra.mxu0 %v577
        %v579 = vand.u32 %v303, 4294901760
        %v580 = vsub.f32 %v303, %v579
        %581 = vmatpush.msra.mxu0 %v580
        %v582 = vand.u32 %v301, 4294901760
        %v583 = vsub.f32 %v301, %v582
        %584 = vmatpush.msra.mxu0 %v583
        %v585 = vand.u32 %v299, 4294901760
        %v586 = vsub.f32 %v299, %v585
        %587 = vmatpush.msra.mxu0 %v586
        %v588 = vand.u32 %v307, 4294901760
        %v589 = vsub.f32 %v307, %v588
        %590 = vmatmul.f32.gmra.mxu0 %v589
        %v591 = vpop.f32.mrf.mxu0
        %v592 = vadd.f32 %v562, %v591
        %593 = vdwg.mxu0
        %594 = vmatpush.msra.mxu0 0.0
        %595 = vmatpush.msra.mxu0 0.0
        %596 = vmatpush.msra.mxu0 0.0
        %597 = vmatpush.msra.mxu0 0.0
        %598 = vmatpush.msra.mxu0 0.0
        %599 = vmatpush.msra.mxu0 0.0
        %600 = vmatpush.msra.mxu0 0.0
        %601 = vmatpush.msra.mxu0 0.0
        %602 = vmatpush.msra.mxu0 0.0
        %603 = vmatpush.msra.mxu0 0.0
        %604 = vmatpush.msra.mxu0 0.0
        %605 = vmatpush.msra.mxu0 0.0
        %v606 = vand.u32 %v305, 4294901760
        %607 = vmatpush.msra.mxu0 %v606
        %v608 = vand.u32 %v303, 4294901760
        %609 = vmatpush.msra.mxu0 %v608
        %v610 = vand.u32 %v301, 4294901760
        %611 = vmatpush.msra.mxu0 %v610
        %v612 = vand.u32 %v299, 4294901760
        %613 = vmatpush.msra.mxu0 %v612
        %v614 = vand.u32 %v307, 4294901760
        %v615 = vsub.f32 %v307, %v614
        %v616 = vand.u32 %v615, 4294901760
        %617 = vmatmul.f32.gmra.mxu0 %v616
        %v618 = vpop.f32.mrf.mxu0
        %v619 = vadd.f32 %v592, %v618
        %620 = vdwg.mxu0
        %621 = vmatpush.msra.mxu0 0.0
        %622 = vmatpush.msra.mxu0 0.0
        %623 = vmatpush.msra.mxu0 0.0
        %624 = vmatpush.msra.mxu0 0.0
        %625 = vmatpush.msra.mxu0 0.0
        %626 = vmatpush.msra.mxu0 0.0
        %627 = vmatpush.msra.mxu0 0.0
        %628 = vmatpush.msra.mxu0 0.0
        %629 = vmatpush.msra.mxu0 0.0
        %630 = vmatpush.msra.mxu0 0.0
        %631 = vmatpush.msra.mxu0 0.0
        %632 = vmatpush.msra.mxu0 0.0
        %v633 = vand.u32 %v305, 4294901760
        %v634 = vsub.f32 %v305, %v633
        %v635 = vand.u32 %v634, 4294901760
        %636 = vmatpush.msra.mxu0 %v635
        %v637 = vand.u32 %v303, 4294901760
        %v638 = vsub.f32 %v303, %v637
        %v639 = vand.u32 %v638, 4294901760
        %640 = vmatpush.msra.mxu0 %v639
        %v641 = vand.u32 %v301, 4294901760
        %v642 = vsub.f32 %v301, %v641
        %v643 = vand.u32 %v642, 4294901760
        %644 = vmatpush.msra.mxu0 %v643
        %v645 = vand.u32 %v299, 4294901760
        %v646 = vsub.f32 %v299, %v645
        %v647 = vand.u32 %v646, 4294901760
        %648 = vmatpush.msra.mxu0 %v647
        %v649 = vand.u32 %v307, 4294901760
        %650 = vmatmul.f32.gmra.mxu0 %v649
        %v651 = vpop.f32.mrf.mxu0
        %v652 = vadd.f32 %v619, %v651
        %653 = vdwg.mxu0
        %654 = vmatpush.msra.mxu0 0.0
        %655 = vmatpush.msra.mxu0 0.0
        %656 = vmatpush.msra.mxu0 0.0
        %657 = vmatpush.msra.mxu0 0.0
        %658 = vmatpush.msra.mxu0 0.0
        %659 = vmatpush.msra.mxu0 0.0
        %660 = vmatpush.msra.mxu0 0.0
        %661 = vmatpush.msra.mxu0 0.0
        %662 = vmatpush.msra.mxu0 0.0
        %663 = vmatpush.msra.mxu0 0.0
        %664 = vmatpush.msra.mxu0 0.0
        %665 = vmatpush.msra.mxu0 0.0
        %v666 = vand.u32 %v305, 4294901760
        %667 = vmatpush.msra.mxu0 %v666
        %v668 = vand.u32 %v303, 4294901760
        %669 = vmatpush.msra.mxu0 %v668
        %v670 = vand.u32 %v301, 4294901760
        %671 = vmatpush.msra.mxu0 %v670
        %v672 = vand.u32 %v299, 4294901760
        %673 = vmatpush.msra.mxu0 %v672
        %v674 = vand.u32 %v307, 4294901760
        %675 = vmatmul.f32.gmra.mxu0 %v674
        %v676 = vpop.f32.mrf.mxu0
        %v677 = vadd.f32 %v652, %v676
        %678 = vdwg.mxu0
        %v680 = vrot.slane %v492, 1
        %681 = vrot.lane.b32.xlu0 %v680, 96
        %v682 = vpop.permute.xlu0 %681
        %v683 = vsel %vm245, %v492, 0
        %v685 = vsel %vm245, %v682, 0
        %687 = vmatpush.xpose.msra.mxu0 0.0
        %688 = vmatpush.xpose.msra.mxu0 0.0
        %689 = vmatpush.xpose.msra.mxu0 0.0
        %690 = vmatpush.xpose.msra.mxu0 0.0
        %691 = vmatpush.xpose.msra.mxu0 0.0
        %692 = vmatpush.xpose.msra.mxu0 0.0
        %693 = vmatpush.xpose.msra.mxu0 0.0
        %694 = vmatpush.xpose.msra.mxu0 0.0
        %695 = vmatpush.xpose.msra.mxu0 0.0
        %696 = vmatpush.xpose.msra.mxu0 0.0
        %697 = vmatpush.xpose.msra.mxu0 0.0
        %698 = vmatpush.xpose.msra.mxu0 0.0
        %699 = vmatpush.xpose.msra.mxu0 0.0
        %700 = vmatpush.xpose.msra.mxu0 0.0
        %701 = vmatpush.xpose.msra.mxu0 0.0
        %v702 = vand.u32 %v685, 4294901760
        %703 = vmatpush.xpose.msra.mxu0 %v702
        %v704 = vand.u32 %v683, 4294901760
        %v705 = vsub.f32 %v683, %v704
        %v706 = vand.u32 %v705, 4294901760
        %v707 = vsub.f32 %v705, %v706
        %v708 = vand.u32 %v707, 4294901760
        %709 = vmatmul.f32.gmra.mxu0 %v708
        %v710 = vpop.f32.mrf.mxu0
        %v711 = vadd.f32 0.0, %v710
        %712 = vdwg.mxu0
        %713 = vmatpush.xpose.msra.mxu0 0.0
        %714 = vmatpush.xpose.msra.mxu0 0.0
        %715 = vmatpush.xpose.msra.mxu0 0.0
        %716 = vmatpush.xpose.msra.mxu0 0.0
        %717 = vmatpush.xpose.msra.mxu0 0.0
        %718 = vmatpush.xpose.msra.mxu0 0.0
        %719 = vmatpush.xpose.msra.mxu0 0.0
        %720 = vmatpush.xpose.msra.mxu0 0.0
        %721 = vmatpush.xpose.msra.mxu0 0.0
        %722 = vmatpush.xpose.msra.mxu0 0.0
        %723 = vmatpush.xpose.msra.mxu0 0.0
        %724 = vmatpush.xpose.msra.mxu0 0.0
        %725 = vmatpush.xpose.msra.mxu0 0.0
        %726 = vmatpush.xpose.msra.mxu0 0.0
        %727 = vmatpush.xpose.msra.mxu0 0.0
        %v728 = vand.u32 %v685, 4294901760
        %v729 = vsub.f32 %v685, %v728
        %v730 = vand.u32 %v729, 4294901760
        %v731 = vsub.f32 %v729, %v730
        %v732 = vand.u32 %v731, 4294901760
        %733 = vmatpush.xpose.msra.mxu0 %v732
        %v734 = vand.u32 %v683, 4294901760
        %735 = vmatmul.f32.gmra.mxu0 %v734
        %v736 = vpop.f32.mrf.mxu0
        %v737 = vadd.f32 %v711, %v736
        %738 = vdwg.mxu0
        %739 = vmatpush.xpose.msra.mxu0 0.0
        %740 = vmatpush.xpose.msra.mxu0 0.0
        %741 = vmatpush.xpose.msra.mxu0 0.0
        %742 = vmatpush.xpose.msra.mxu0 0.0
        %743 = vmatpush.xpose.msra.mxu0 0.0
        %744 = vmatpush.xpose.msra.mxu0 0.0
        %745 = vmatpush.xpose.msra.mxu0 0.0
        %746 = vmatpush.xpose.msra.mxu0 0.0
        %747 = vmatpush.xpose.msra.mxu0 0.0
        %748 = vmatpush.xpose.msra.mxu0 0.0
        %749 = vmatpush.xpose.msra.mxu0 0.0
        %750 = vmatpush.xpose.msra.mxu0 0.0
        %751 = vmatpush.xpose.msra.mxu0 0.0
        %752 = vmatpush.xpose.msra.mxu0 0.0
        %753 = vmatpush.xpose.msra.mxu0 0.0
        %v754 = vand.u32 %v685, 4294901760
        %v755 = vsub.f32 %v685, %v754
        %756 = vmatpush.xpose.msra.mxu0 %v755
        %v757 = vand.u32 %v683, 4294901760
        %v758 = vsub.f32 %v683, %v757
        %759 = vmatmul.f32.gmra.mxu0 %v758
        %v760 = vpop.f32.mrf.mxu0
        %v761 = vadd.f32 %v737, %v760
        %762 = vdwg.mxu0
        %763 = vmatpush.xpose.msra.mxu0 0.0
        %764 = vmatpush.xpose.msra.mxu0 0.0
        %765 = vmatpush.xpose.msra.mxu0 0.0
        %766 = vmatpush.xpose.msra.mxu0 0.0
        %767 = vmatpush.xpose.msra.mxu0 0.0
        %768 = vmatpush.xpose.msra.mxu0 0.0
        %769 = vmatpush.xpose.msra.mxu0 0.0
        %770 = vmatpush.xpose.msra.mxu0 0.0
        %771 = vmatpush.xpose.msra.mxu0 0.0
        %772 = vmatpush.xpose.msra.mxu0 0.0
        %773 = vmatpush.xpose.msra.mxu0 0.0
        %774 = vmatpush.xpose.msra.mxu0 0.0
        %775 = vmatpush.xpose.msra.mxu0 0.0
        %776 = vmatpush.xpose.msra.mxu0 0.0
        %777 = vmatpush.xpose.msra.mxu0 0.0
        %v778 = vand.u32 %v685, 4294901760
        %779 = vmatpush.xpose.msra.mxu0 %v778
        %v780 = vand.u32 %v683, 4294901760
        %v781 = vsub.f32 %v683, %v780
        %v782 = vand.u32 %v781, 4294901760
        %783 = vmatmul.f32.gmra.mxu0 %v782
        %v784 = vpop.f32.mrf.mxu0
        %v785 = vadd.f32 %v761, %v784
        %786 = vdwg.mxu0
        %787 = vmatpush.xpose.msra.mxu0 0.0
        %788 = vmatpush.xpose.msra.mxu0 0.0
        %789 = vmatpush.xpose.msra.mxu0 0.0
        %790 = vmatpush.xpose.msra.mxu0 0.0
        %791 = vmatpush.xpose.msra.mxu0 0.0
        %792 = vmatpush.xpose.msra.mxu0 0.0
        %793 = vmatpush.xpose.msra.mxu0 0.0
        %794 = vmatpush.xpose.msra.mxu0 0.0
        %795 = vmatpush.xpose.msra.mxu0 0.0
        %796 = vmatpush.xpose.msra.mxu0 0.0
        %797 = vmatpush.xpose.msra.mxu0 0.0
        %798 = vmatpush.xpose.msra.mxu0 0.0
        %799 = vmatpush.xpose.msra.mxu0 0.0
        %800 = vmatpush.xpose.msra.mxu0 0.0
        %801 = vmatpush.xpose.msra.mxu0 0.0
        %v802 = vand.u32 %v685, 4294901760
        %v803 = vsub.f32 %v685, %v802
        %v804 = vand.u32 %v803, 4294901760
        %805 = vmatpush.xpose.msra.mxu0 %v804
        %v806 = vand.u32 %v683, 4294901760
        %807 = vmatmul.f32.gmra.mxu0 %v806
        %v808 = vpop.f32.mrf.mxu0
        %v809 = vadd.f32 %v785, %v808
        %810 = vdwg.mxu0
        %811 = vmatpush.xpose.msra.mxu0 0.0
        %812 = vmatpush.xpose.msra.mxu0 0.0
        %813 = vmatpush.xpose.msra.mxu0 0.0
        %814 = vmatpush.xpose.msra.mxu0 0.0
        %815 = vmatpush.xpose.msra.mxu0 0.0
        %816 = vmatpush.xpose.msra.mxu0 0.0
        %817 = vmatpush.xpose.msra.mxu0 0.0
        %818 = vmatpush.xpose.msra.mxu0 0.0
        %819 = vmatpush.xpose.msra.mxu0 0.0
        %820 = vmatpush.xpose.msra.mxu0 0.0
        %821 = vmatpush.xpose.msra.mxu0 0.0
        %822 = vmatpush.xpose.msra.mxu0 0.0
        %823 = vmatpush.xpose.msra.mxu0 0.0
        %824 = vmatpush.xpose.msra.mxu0 0.0
        %825 = vmatpush.xpose.msra.mxu0 0.0
        %v826 = vand.u32 %v685, 4294901760
        %827 = vmatpush.xpose.msra.mxu0 %v826
        %v828 = vand.u32 %v683, 4294901760
        %829 = vmatmul.f32.gmra.mxu0 %v828
        %v830 = vpop.f32.mrf.mxu0
        %v831 = vadd.f32 %v809, %v830
        %832 = vdwg.mxu0
        %vm833 = vcmask 24576
        %v834 = vsel %vm833, %v831, -inf
        %835 = vmax.xlane.f32.xlu0 %v834
        %v836 = vpop.xlane.xlu0 %835
        %v837 = vsub.f32 %v831, %v836
        %v838 = vmul.f32 %v837, 1.442695
        %v839 = vpow.pop %v838
        %v840 = vsel %vm833, %v839, 0.0
        %841 = vadd.xlane.f32.xlu0 %v840
        %v842 = vpop.xlane.xlu0 %841
        %v843 = vrcp.pop %v842
        %v844 = vmul.f32 %v842, %v843
        %v845 = vsub.f32 1.0, %v844
        %v846 = vmul.f32 %v843, %v845
        %v847 = vadd.f32 %v843, %v846
        %vm848 = vweird.f32 %v842
        %vm849 = vweird.f32 %v843
        %vm850 = vmor %vm848, %vm849
        %v851 = vsel %vm850, %v843, %v847
        %v852 = vand.u32 2147483647, %v842
        %vm853 = vcmp.eq.f32.partialorder %v852, 8.507059e+37
        %v854 = vand.u32 %v842, 2147483648
        %v855 = vor.u32 1.1754944e-38, %v854
        %v856 = vsel %vm853, %v855, %v851
        %v857 = vmul.f32 %v839, %v856
        %858 = vrot.lane.b32.xlu0 %v680, 64
        %v859 = vpop.permute.xlu0 %858
        %vm860 = vcmask 31744
        %v862 = vsel %vm860, %v857, 0
        %vm864 = vcmask 1043456
        %v865 = vsel %vm864, %v859, 0
        %867 = vmatpush.msra.mxu0 0.0
        %868 = vmatpush.msra.mxu0 0.0
        %869 = vmatpush.msra.mxu0 0.0
        %870 = vmatpush.msra.mxu0 0.0
        %871 = vmatpush.msra.mxu0 0.0
        %872 = vmatpush.msra.mxu0 0.0
        %873 = vmatpush.msra.mxu0 0.0
        %874 = vmatpush.msra.mxu0 0.0
        %875 = vmatpush.msra.mxu0 0.0
        %876 = vmatpush.msra.mxu0 0.0
        %877 = vmatpush.msra.mxu0 0.0
        %878 = vmatpush.msra.mxu0 0.0
        %879 = vmatpush.msra.mxu0 0.0
        %880 = vmatpush.msra.mxu0 0.0
        %881 = vmatpush.msra.mxu0 0.0
        %v882 = vand.u32 %v865, 4294901760
        %883 = vmatpush.msra.mxu0 %v882
        %v884 = vand.u32 %v862, 4294901760
        %v885 = vsub.f32 %v862, %v884
        %v886 = vand.u32 %v885, 4294901760
        %v887 = vsub.f32 %v885, %v886
        %v888 = vand.u32 %v887, 4294901760
        %889 = vmatmul.f32.gmra.mxu0 %v888
        %v890 = vpop.f32.mrf.mxu0
        %v891 = vadd.f32 0.0, %v890
        %892 = vdwg.mxu0
        %893 = vmatpush.msra.mxu0 0.0
        %894 = vmatpush.msra.mxu0 0.0
        %895 = vmatpush.msra.mxu0 0.0
        %896 = vmatpush.msra.mxu0 0.0
        %897 = vmatpush.msra.mxu0 0.0
        %898 = vmatpush.msra.mxu0 0.0
        %899 = vmatpush.msra.mxu0 0.0
        %900 = vmatpush.msra.mxu0 0.0
        %901 = vmatpush.msra.mxu0 0.0
        %902 = vmatpush.msra.mxu0 0.0
        %903 = vmatpush.msra.mxu0 0.0
        %904 = vmatpush.msra.mxu0 0.0
        %905 = vmatpush.msra.mxu0 0.0
        %906 = vmatpush.msra.mxu0 0.0
        %907 = vmatpush.msra.mxu0 0.0
        %v908 = vand.u32 %v865, 4294901760
        %v909 = vsub.f32 %v865, %v908
        %v910 = vand.u32 %v909, 4294901760
        %v911 = vsub.f32 %v909, %v910
        %v912 = vand.u32 %v911, 4294901760
        %913 = vmatpush.msra.mxu0 %v912
        %v914 = vand.u32 %v862, 4294901760
        %915 = vmatmul.f32.gmra.mxu0 %v914
        %v916 = vpop.f32.mrf.mxu0
        %v917 = vadd.f32 %v891, %v916
        %918 = vdwg.mxu0
        %919 = vmatpush.msra.mxu0 0.0
        %920 = vmatpush.msra.mxu0 0.0
        %921 = vmatpush.msra.mxu0 0.0
        %922 = vmatpush.msra.mxu0 0.0
        %923 = vmatpush.msra.mxu0 0.0
        %924 = vmatpush.msra.mxu0 0.0
        %925 = vmatpush.msra.mxu0 0.0
        %926 = vmatpush.msra.mxu0 0.0
        %927 = vmatpush.msra.mxu0 0.0
        %928 = vmatpush.msra.mxu0 0.0
        %929 = vmatpush.msra.mxu0 0.0
        %930 = vmatpush.msra.mxu0 0.0
        %931 = vmatpush.msra.mxu0 0.0
        %932 = vmatpush.msra.mxu0 0.0
        %933 = vmatpush.msra.mxu0 0.0
        %v934 = vand.u32 %v865, 4294901760
        %v935 = vsub.f32 %v865, %v934
        %936 = vmatpush.msra.mxu0 %v935
        %v937 = vand.u32 %v862, 4294901760
        %v938 = vsub.f32 %v862, %v937
        %939 = vmatmul.f32.gmra.mxu0 %v938
        %v940 = vpop.f32.mrf.mxu0
        %v941 = vadd.f32 %v917, %v940
        %942 = vdwg.mxu0
        %943 = vmatpush.msra.mxu0 0.0
        %944 = vmatpush.msra.mxu0 0.0
        %945 = vmatpush.msra.mxu0 0.0
        %946 = vmatpush.msra.mxu0 0.0
        %947 = vmatpush.msra.mxu0 0.0
        %948 = vmatpush.msra.mxu0 0.0
        %949 = vmatpush.msra.mxu0 0.0
        %950 = vmatpush.msra.mxu0 0.0
        %951 = vmatpush.msra.mxu0 0.0
        %952 = vmatpush.msra.mxu0 0.0
        %953 = vmatpush.msra.mxu0 0.0
        %954 = vmatpush.msra.mxu0 0.0
        %955 = vmatpush.msra.mxu0 0.0
        %956 = vmatpush.msra.mxu0 0.0
        %957 = vmatpush.msra.mxu0 0.0
        %v958 = vand.u32 %v865, 4294901760
        %959 = vmatpush.msra.mxu0 %v958
        %v960 = vand.u32 %v862, 4294901760
        %v961 = vsub.f32 %v862, %v960
        %v962 = vand.u32 %v961, 4294901760
        %963 = vmatmul.f32.gmra.mxu0 %v962
        %v964 = vpop.f32.mrf.mxu0
        %v965 = vadd.f32 %v941, %v964
        %966 = vdwg.mxu0
        %967 = vmatpush.msra.mxu0 0.0
        %968 = vmatpush.msra.mxu0 0.0
        %969 = vmatpush.msra.mxu0 0.0
        %970 = vmatpush.msra.mxu0 0.0
        %971 = vmatpush.msra.mxu0 0.0
        %972 = vmatpush.msra.mxu0 0.0
        %973 = vmatpush.msra.mxu0 0.0
        %974 = vmatpush.msra.mxu0 0.0
        %975 = vmatpush.msra.mxu0 0.0
        %976 = vmatpush.msra.mxu0 0.0
        %977 = vmatpush.msra.mxu0 0.0
        %978 = vmatpush.msra.mxu0 0.0
        %979 = vmatpush.msra.mxu0 0.0
        %980 = vmatpush.msra.mxu0 0.0
        %981 = vmatpush.msra.mxu0 0.0
        %v982 = vand.u32 %v865, 4294901760
        %v983 = vsub.f32 %v865, %v982
        %v984 = vand.u32 %v983, 4294901760
        %985 = vmatpush.msra.mxu0 %v984
        %v986 = vand.u32 %v862, 4294901760
        %987 = vmatmul.f32.gmra.mxu0 %v986
        %v988 = vpop.f32.mrf.mxu0
        %v989 = vadd.f32 %v965, %v988
        %990 = vdwg.mxu0
        %991 = vmatpush.msra.mxu0 0.0
        %992 = vmatpush.msra.mxu0 0.0
        %993 = vmatpush.msra.mxu0 0.0
        %994 = vmatpush.msra.mxu0 0.0
        %995 = vmatpush.msra.mxu0 0.0
        %996 = vmatpush.msra.mxu0 0.0
        %997 = vmatpush.msra.mxu0 0.0
        %998 = vmatpush.msra.mxu0 0.0
        %999 = vmatpush.msra.mxu0 0.0
        %1000 = vmatpush.msra.mxu0 0.0
        %1001 = vmatpush.msra.mxu0 0.0
        %1002 = vmatpush.msra.mxu0 0.0
        %1003 = vmatpush.msra.mxu0 0.0
        %1004 = vmatpush.msra.mxu0 0.0
        %1005 = vmatpush.msra.mxu0 0.0
        %v1006 = vand.u32 %v865, 4294901760
        %1007 = vmatpush.msra.mxu0 %v1006
        %v1008 = vand.u32 %v862, 4294901760
        %1009 = vmatmul.f32.gmra.mxu0 %v1008
        %v1010 = vpop.f32.mrf.mxu0
        %v1011 = vadd.f32 %v989, %v1010
        %1012 = vdwg.mxu0
        %v1013 = vadd.f32 %v492, %v1011
        %v1015 = vsel %vm245, %v1013, 0
        %v1017 = vsel %vm245, %v859, 0
        %1019 = vmatpush.xpose.msra.mxu0 0.0
        %1020 = vmatpush.xpose.msra.mxu0 0.0
        %1021 = vmatpush.xpose.msra.mxu0 0.0
        %1022 = vmatpush.xpose.msra.mxu0 0.0
        %1023 = vmatpush.xpose.msra.mxu0 0.0
        %1024 = vmatpush.xpose.msra.mxu0 0.0
        %1025 = vmatpush.xpose.msra.mxu0 0.0
        %1026 = vmatpush.xpose.msra.mxu0 0.0
        %1027 = vmatpush.xpose.msra.mxu0 0.0
        %1028 = vmatpush.xpose.msra.mxu0 0.0
        %1029 = vmatpush.xpose.msra.mxu0 0.0
        %1030 = vmatpush.xpose.msra.mxu0 0.0
        %1031 = vmatpush.xpose.msra.mxu0 0.0
        %1032 = vmatpush.xpose.msra.mxu0 0.0
        %1033 = vmatpush.xpose.msra.mxu0 0.0
        %v1034 = vand.u32 %v1017, 4294901760
        %1035 = vmatpush.xpose.msra.mxu0 %v1034
        %v1036 = vand.u32 %v1015, 4294901760
        %v1037 = vsub.f32 %v1015, %v1036
        %v1038 = vand.u32 %v1037, 4294901760
        %v1039 = vsub.f32 %v1037, %v1038
        %v1040 = vand.u32 %v1039, 4294901760
        %1041 = vmatmul.f32.gmra.mxu0 %v1040
        %v1042 = vpop.f32.mrf.mxu0
        %v1043 = vadd.f32 0.0, %v1042
        %1044 = vdwg.mxu0
        %1045 = vmatpush.xpose.msra.mxu0 0.0
        %1046 = vmatpush.xpose.msra.mxu0 0.0
        %1047 = vmatpush.xpose.msra.mxu0 0.0
        %1048 = vmatpush.xpose.msra.mxu0 0.0
        %1049 = vmatpush.xpose.msra.mxu0 0.0
        %1050 = vmatpush.xpose.msra.mxu0 0.0
        %1051 = vmatpush.xpose.msra.mxu0 0.0
        %1052 = vmatpush.xpose.msra.mxu0 0.0
        %1053 = vmatpush.xpose.msra.mxu0 0.0
        %1054 = vmatpush.xpose.msra.mxu0 0.0
        %1055 = vmatpush.xpose.msra.mxu0 0.0
        %1056 = vmatpush.xpose.msra.mxu0 0.0
        %1057 = vmatpush.xpose.msra.mxu0 0.0
        %1058 = vmatpush.xpose.msra.mxu0 0.0
        %1059 = vmatpush.xpose.msra.mxu0 0.0
        %v1060 = vand.u32 %v1017, 4294901760
        %v1061 = vsub.f32 %v1017, %v1060
        %v1062 = vand.u32 %v1061, 4294901760
        %v1063 = vsub.f32 %v1061, %v1062
        %v1064 = vand.u32 %v1063, 4294901760
        %1065 = vmatpush.xpose.msra.mxu0 %v1064
        %v1066 = vand.u32 %v1015, 4294901760
        %1067 = vmatmul.f32.gmra.mxu0 %v1066
        %v1068 = vpop.f32.mrf.mxu0
        %v1069 = vadd.f32 %v1043, %v1068
        %1070 = vdwg.mxu0
        %1071 = vmatpush.xpose.msra.mxu0 0.0
        %1072 = vmatpush.xpose.msra.mxu0 0.0
        %1073 = vmatpush.xpose.msra.mxu0 0.0
        %1074 = vmatpush.xpose.msra.mxu0 0.0
        %1075 = vmatpush.xpose.msra.mxu0 0.0
        %1076 = vmatpush.xpose.msra.mxu0 0.0
        %1077 = vmatpush.xpose.msra.mxu0 0.0
        %1078 = vmatpush.xpose.msra.mxu0 0.0
        %1079 = vmatpush.xpose.msra.mxu0 0.0
        %1080 = vmatpush.xpose.msra.mxu0 0.0
        %1081 = vmatpush.xpose.msra.mxu0 0.0
        %1082 = vmatpush.xpose.msra.mxu0 0.0
        %1083 = vmatpush.xpose.msra.mxu0 0.0
        %1084 = vmatpush.xpose.msra.mxu0 0.0
        %1085 = vmatpush.xpose.msra.mxu0 0.0
        %v1086 = vand.u32 %v1017, 4294901760
        %v1087 = vsub.f32 %v1017, %v1086
        %1088 = vmatpush.xpose.msra.mxu0 %v1087
        %v1089 = vand.u32 %v1015, 4294901760
        %v1090 = vsub.f32 %v1015, %v1089
        %1091 = vmatmul.f32.gmra.mxu0 %v1090
        %v1092 = vpop.f32.mrf.mxu0
        %v1093 = vadd.f32 %v1069, %v1092
        %1094 = vdwg.mxu0
        %1095 = vmatpush.xpose.msra.mxu0 0.0
        %1096 = vmatpush.xpose.msra.mxu0 0.0
        %1097 = vmatpush.xpose.msra.mxu0 0.0
        %1098 = vmatpush.xpose.msra.mxu0 0.0
        %1099 = vmatpush.xpose.msra.mxu0 0.0
        %1100 = vmatpush.xpose.msra.mxu0 0.0
        %1101 = vmatpush.xpose.msra.mxu0 0.0
        %1102 = vmatpush.xpose.msra.mxu0 0.0
        %1103 = vmatpush.xpose.msra.mxu0 0.0
        %1104 = vmatpush.xpose.msra.mxu0 0.0
        %1105 = vmatpush.xpose.msra.mxu0 0.0
        %1106 = vmatpush.xpose.msra.mxu0 0.0
        %1107 = vmatpush.xpose.msra.mxu0 0.0
        %1108 = vmatpush.xpose.msra.mxu0 0.0
        %1109 = vmatpush.xpose.msra.mxu0 0.0
        %v1110 = vand.u32 %v1017, 4294901760
        %1111 = vmatpush.xpose.msra.mxu0 %v1110
        %v1112 = vand.u32 %v1015, 4294901760
        %v1113 = vsub.f32 %v1015, %v1112
        %v1114 = vand.u32 %v1113, 4294901760
        %1115 = vmatmul.f32.gmra.mxu0 %v1114
        %v1116 = vpop.f32.mrf.mxu0
        %v1117 = vadd.f32 %v1093, %v1116
        %1118 = vdwg.mxu0
        %1119 = vmatpush.xpose.msra.mxu0 0.0
        %1120 = vmatpush.xpose.msra.mxu0 0.0
        %1121 = vmatpush.xpose.msra.mxu0 0.0
        %1122 = vmatpush.xpose.msra.mxu0 0.0
        %1123 = vmatpush.xpose.msra.mxu0 0.0
        %1124 = vmatpush.xpose.msra.mxu0 0.0
        %1125 = vmatpush.xpose.msra.mxu0 0.0
        %1126 = vmatpush.xpose.msra.mxu0 0.0
        %1127 = vmatpush.xpose.msra.mxu0 0.0
        %1128 = vmatpush.xpose.msra.mxu0 0.0
        %1129 = vmatpush.xpose.msra.mxu0 0.0
        %1130 = vmatpush.xpose.msra.mxu0 0.0
        %1131 = vmatpush.xpose.msra.mxu0 0.0
        %1132 = vmatpush.xpose.msra.mxu0 0.0
        %1133 = vmatpush.xpose.msra.mxu0 0.0
        %v1134 = vand.u32 %v1017, 4294901760
        %v1135 = vsub.f32 %v1017, %v1134
        %v1136 = vand.u32 %v1135, 4294901760
        %1137 = vmatpush.xpose.msra.mxu0 %v1136
        %v1138 = vand.u32 %v1015, 4294901760
        %1139 = vmatmul.f32.gmra.mxu0 %v1138
        %v1140 = vpop.f32.mrf.mxu0
        %v1141 = vadd.f32 %v1117, %v1140
        %1142 = vdwg.mxu0
        %1143 = vmatpush.xpose.msra.mxu0 0.0
        %1144 = vmatpush.xpose.msra.mxu0 0.0
        %1145 = vmatpush.xpose.msra.mxu0 0.0
        %1146 = vmatpush.xpose.msra.mxu0 0.0
        %1147 = vmatpush.xpose.msra.mxu0 0.0
        %1148 = vmatpush.xpose.msra.mxu0 0.0
        %1149 = vmatpush.xpose.msra.mxu0 0.0
        %1150 = vmatpush.xpose.msra.mxu0 0.0
        %1151 = vmatpush.xpose.msra.mxu0 0.0
        %1152 = vmatpush.xpose.msra.mxu0 0.0
        %1153 = vmatpush.xpose.msra.mxu0 0.0
        %1154 = vmatpush.xpose.msra.mxu0 0.0
        %1155 = vmatpush.xpose.msra.mxu0 0.0
        %1156 = vmatpush.xpose.msra.mxu0 0.0
        %1157 = vmatpush.xpose.msra.mxu0 0.0
        %v1158 = vand.u32 %v1017, 4294901760
        %1159 = vmatpush.xpose.msra.mxu0 %v1158
        %v1160 = vand.u32 %v1015, 4294901760
        %1161 = vmatmul.f32.gmra.mxu0 %v1160
        %v1162 = vpop.f32.mrf.mxu0
        %v1163 = vadd.f32 %v1141, %v1162
        %1164 = vdwg.mxu0
        %v1165 = vsel %vm833, %v1163, -inf
        %1166 = vmax.xlane.f32.xlu0 %v1165
        %v1167 = vpop.xlane.xlu0 %1166
        %v1168 = vsub.f32 %v1163, %v1167
        %v1169 = vmul.f32 %v1168, 1.442695
        %v1170 = vpow.pop %v1169
        %v1171 = vsel %vm833, %v1170, 0.0
        %1172 = vadd.xlane.f32.xlu0 %v1171
        %v1173 = vpop.xlane.xlu0 %1172
        %v1174 = vrcp.pop %v1173
        %v1175 = vmul.f32 %v1173, %v1174
        %v1176 = vsub.f32 1.0, %v1175
        %v1177 = vmul.f32 %v1174, %v1176
        %v1178 = vadd.f32 %v1174, %v1177
        %vm1179 = vweird.f32 %v1173
        %vm1180 = vweird.f32 %v1174
        %vm1181 = vmor %vm1179, %vm1180
        %v1182 = vsel %vm1181, %v1174, %v1178
        %v1183 = vand.u32 2147483647, %v1173
        %vm1184 = vcmp.eq.f32.partialorder %v1183, 8.507059e+37
        %v1185 = vand.u32 %v1173, 2147483648
        %v1186 = vor.u32 1.1754944e-38, %v1185
        %v1187 = vsel %vm1184, %v1186, %v1182
        %v1188 = vmul.f32 %v1170, %v1187
        %1189 = vrot.lane.b32.xlu0 %v680, 32
        %v1190 = vpop.permute.xlu0 %1189
        %v1192 = vsel %vm860, %v1188, 0
        %v1194 = vsel %vm864, %v1190, 0
        %1196 = vmatpush.msra.mxu0 0.0
        %1197 = vmatpush.msra.mxu0 0.0
        %1198 = vmatpush.msra.mxu0 0.0
        %1199 = vmatpush.msra.mxu0 0.0
        %1200 = vmatpush.msra.mxu0 0.0
        %1201 = vmatpush.msra.mxu0 0.0
        %1202 = vmatpush.msra.mxu0 0.0
        %1203 = vmatpush.msra.mxu0 0.0
        %1204 = vmatpush.msra.mxu0 0.0
        %1205 = vmatpush.msra.mxu0 0.0
        %1206 = vmatpush.msra.mxu0 0.0
        %1207 = vmatpush.msra.mxu0 0.0
        %1208 = vmatpush.msra.mxu0 0.0
        %1209 = vmatpush.msra.mxu0 0.0
        %1210 = vmatpush.msra.mxu0 0.0
        %v1211 = vand.u32 %v1194, 4294901760
        %1212 = vmatpush.msra.mxu0 %v1211
        %v1213 = vand.u32 %v1192, 4294901760
        %v1214 = vsub.f32 %v1192, %v1213
        %v1215 = vand.u32 %v1214, 4294901760
        %v1216 = vsub.f32 %v1214, %v1215
        %v1217 = vand.u32 %v1216, 4294901760
        %1218 = vmatmul.f32.gmra.mxu0 %v1217
        %v1219 = vpop.f32.mrf.mxu0
        %v1220 = vadd.f32 0.0, %v1219
        %1221 = vdwg.mxu0
        %1222 = vmatpush.msra.mxu0 0.0
        %1223 = vmatpush.msra.mxu0 0.0
        %1224 = vmatpush.msra.mxu0 0.0
        %1225 = vmatpush.msra.mxu0 0.0
        %1226 = vmatpush.msra.mxu0 0.0
        %1227 = vmatpush.msra.mxu0 0.0
        %1228 = vmatpush.msra.mxu0 0.0
        %1229 = vmatpush.msra.mxu0 0.0
        %1230 = vmatpush.msra.mxu0 0.0
        %1231 = vmatpush.msra.mxu0 0.0
        %1232 = vmatpush.msra.mxu0 0.0
        %1233 = vmatpush.msra.mxu0 0.0
        %1234 = vmatpush.msra.mxu0 0.0
        %1235 = vmatpush.msra.mxu0 0.0
        %1236 = vmatpush.msra.mxu0 0.0
        %v1237 = vand.u32 %v1194, 4294901760
        %v1238 = vsub.f32 %v1194, %v1237
        %v1239 = vand.u32 %v1238, 4294901760
        %v1240 = vsub.f32 %v1238, %v1239
        %v1241 = vand.u32 %v1240, 4294901760
        %1242 = vmatpush.msra.mxu0 %v1241
        %v1243 = vand.u32 %v1192, 4294901760
        %1244 = vmatmul.f32.gmra.mxu0 %v1243
        %v1245 = vpop.f32.mrf.mxu0
        %v1246 = vadd.f32 %v1220, %v1245
        %1247 = vdwg.mxu0
        %1248 = vmatpush.msra.mxu0 0.0
        %1249 = vmatpush.msra.mxu0 0.0
        %1250 = vmatpush.msra.mxu0 0.0
        %1251 = vmatpush.msra.mxu0 0.0
        %1252 = vmatpush.msra.mxu0 0.0
        %1253 = vmatpush.msra.mxu0 0.0
        %1254 = vmatpush.msra.mxu0 0.0
        %1255 = vmatpush.msra.mxu0 0.0
        %1256 = vmatpush.msra.mxu0 0.0
        %1257 = vmatpush.msra.mxu0 0.0
        %1258 = vmatpush.msra.mxu0 0.0
        %1259 = vmatpush.msra.mxu0 0.0
        %1260 = vmatpush.msra.mxu0 0.0
        %1261 = vmatpush.msra.mxu0 0.0
        %1262 = vmatpush.msra.mxu0 0.0
        %v1263 = vand.u32 %v1194, 4294901760
        %v1264 = vsub.f32 %v1194, %v1263
        %1265 = vmatpush.msra.mxu0 %v1264
        %v1266 = vand.u32 %v1192, 4294901760
        %v1267 = vsub.f32 %v1192, %v1266
        %1268 = vmatmul.f32.gmra.mxu0 %v1267
        %v1269 = vpop.f32.mrf.mxu0
        %v1270 = vadd.f32 %v1246, %v1269
        %1271 = vdwg.mxu0
        %1272 = vmatpush.msra.mxu0 0.0
        %1273 = vmatpush.msra.mxu0 0.0
        %1274 = vmatpush.msra.mxu0 0.0
        %1275 = vmatpush.msra.mxu0 0.0
        %1276 = vmatpush.msra.mxu0 0.0
        %1277 = vmatpush.msra.mxu0 0.0
        %1278 = vmatpush.msra.mxu0 0.0
        %1279 = vmatpush.msra.mxu0 0.0
        %1280 = vmatpush.msra.mxu0 0.0
        %1281 = vmatpush.msra.mxu0 0.0
        %1282 = vmatpush.msra.mxu0 0.0
        %1283 = vmatpush.msra.mxu0 0.0
        %1284 = vmatpush.msra.mxu0 0.0
        %1285 = vmatpush.msra.mxu0 0.0
        %1286 = vmatpush.msra.mxu0 0.0
        %v1287 = vand.u32 %v1194, 4294901760
        %1288 = vmatpush.msra.mxu0 %v1287
        %v1289 = vand.u32 %v1192, 4294901760
        %v1290 = vsub.f32 %v1192, %v1289
        %v1291 = vand.u32 %v1290, 4294901760
        %1292 = vmatmul.f32.gmra.mxu0 %v1291
        %v1293 = vpop.f32.mrf.mxu0
        %v1294 = vadd.f32 %v1270, %v1293
        %1295 = vdwg.mxu0
        %1296 = vmatpush.msra.mxu0 0.0
        %1297 = vmatpush.msra.mxu0 0.0
        %1298 = vmatpush.msra.mxu0 0.0
        %1299 = vmatpush.msra.mxu0 0.0
        %1300 = vmatpush.msra.mxu0 0.0
        %1301 = vmatpush.msra.mxu0 0.0
        %1302 = vmatpush.msra.mxu0 0.0
        %1303 = vmatpush.msra.mxu0 0.0
        %1304 = vmatpush.msra.mxu0 0.0
        %1305 = vmatpush.msra.mxu0 0.0
        %1306 = vmatpush.msra.mxu0 0.0
        %1307 = vmatpush.msra.mxu0 0.0
        %1308 = vmatpush.msra.mxu0 0.0
        %1309 = vmatpush.msra.mxu0 0.0
        %1310 = vmatpush.msra.mxu0 0.0
        %v1311 = vand.u32 %v1194, 4294901760
        %v1312 = vsub.f32 %v1194, %v1311
        %v1313 = vand.u32 %v1312, 4294901760
        %1314 = vmatpush.msra.mxu0 %v1313
        %v1315 = vand.u32 %v1192, 4294901760
        %1316 = vmatmul.f32.gmra.mxu0 %v1315
        %v1317 = vpop.f32.mrf.mxu0
        %v1318 = vadd.f32 %v1294, %v1317
        %1319 = vdwg.mxu0
        %1320 = vmatpush.msra.mxu0 0.0
        %1321 = vmatpush.msra.mxu0 0.0
        %1322 = vmatpush.msra.mxu0 0.0
        %1323 = vmatpush.msra.mxu0 0.0
        %1324 = vmatpush.msra.mxu0 0.0
        %1325 = vmatpush.msra.mxu0 0.0
        %1326 = vmatpush.msra.mxu0 0.0
        %1327 = vmatpush.msra.mxu0 0.0
        %1328 = vmatpush.msra.mxu0 0.0
        %1329 = vmatpush.msra.mxu0 0.0
        %1330 = vmatpush.msra.mxu0 0.0
        %1331 = vmatpush.msra.mxu0 0.0
        %1332 = vmatpush.msra.mxu0 0.0
        %1333 = vmatpush.msra.mxu0 0.0
        %1334 = vmatpush.msra.mxu0 0.0
        %v1335 = vand.u32 %v1194, 4294901760
        %1336 = vmatpush.msra.mxu0 %v1335
        %v1337 = vand.u32 %v1192, 4294901760
        %1338 = vmatmul.f32.gmra.mxu0 %v1337
        %v1339 = vpop.f32.mrf.mxu0
        %v1340 = vadd.f32 %v1318, %v1339
        %1341 = vdwg.mxu0
        %v1342 = vadd.f32 %v1013, %v1340
        %v1344 = vsel %vm245, %v1342, 0
        %v1346 = vsel %vm245, %v1190, 0
        %1348 = vmatpush.xpose.msra.mxu0 0.0
        %1349 = vmatpush.xpose.msra.mxu0 0.0
        %1350 = vmatpush.xpose.msra.mxu0 0.0
        %1351 = vmatpush.xpose.msra.mxu0 0.0
        %1352 = vmatpush.xpose.msra.mxu0 0.0
        %1353 = vmatpush.xpose.msra.mxu0 0.0
        %1354 = vmatpush.xpose.msra.mxu0 0.0
        %1355 = vmatpush.xpose.msra.mxu0 0.0
        %1356 = vmatpush.xpose.msra.mxu0 0.0
        %1357 = vmatpush.xpose.msra.mxu0 0.0
        %1358 = vmatpush.xpose.msra.mxu0 0.0
        %1359 = vmatpush.xpose.msra.mxu0 0.0
        %1360 = vmatpush.xpose.msra.mxu0 0.0
        %1361 = vmatpush.xpose.msra.mxu0 0.0
        %1362 = vmatpush.xpose.msra.mxu0 0.0
        %v1363 = vand.u32 %v1346, 4294901760
        %1364 = vmatpush.xpose.msra.mxu0 %v1363
        %v1365 = vand.u32 %v1344, 4294901760
        %v1366 = vsub.f32 %v1344, %v1365
        %v1367 = vand.u32 %v1366, 4294901760
        %v1368 = vsub.f32 %v1366, %v1367
        %v1369 = vand.u32 %v1368, 4294901760
        %1370 = vmatmul.f32.gmra.mxu0 %v1369
        %v1371 = vpop.f32.mrf.mxu0
        %v1372 = vadd.f32 0.0, %v1371
        %1373 = vdwg.mxu0
        %1374 = vmatpush.xpose.msra.mxu0 0.0
        %1375 = vmatpush.xpose.msra.mxu0 0.0
        %1376 = vmatpush.xpose.msra.mxu0 0.0
        %1377 = vmatpush.xpose.msra.mxu0 0.0
        %1378 = vmatpush.xpose.msra.mxu0 0.0
        %1379 = vmatpush.xpose.msra.mxu0 0.0
        %1380 = vmatpush.xpose.msra.mxu0 0.0
        %1381 = vmatpush.xpose.msra.mxu0 0.0
        %1382 = vmatpush.xpose.msra.mxu0 0.0
        %1383 = vmatpush.xpose.msra.mxu0 0.0
        %1384 = vmatpush.xpose.msra.mxu0 0.0
        %1385 = vmatpush.xpose.msra.mxu0 0.0
        %1386 = vmatpush.xpose.msra.mxu0 0.0
        %1387 = vmatpush.xpose.msra.mxu0 0.0
        %1388 = vmatpush.xpose.msra.mxu0 0.0
        %v1389 = vand.u32 %v1346, 4294901760
        %v1390 = vsub.f32 %v1346, %v1389
        %v1391 = vand.u32 %v1390, 4294901760
        %v1392 = vsub.f32 %v1390, %v1391
        %v1393 = vand.u32 %v1392, 4294901760
        %1394 = vmatpush.xpose.msra.mxu0 %v1393
        %v1395 = vand.u32 %v1344, 4294901760
        %1396 = vmatmul.f32.gmra.mxu0 %v1395
        %v1397 = vpop.f32.mrf.mxu0
        %v1398 = vadd.f32 %v1372, %v1397
        %1399 = vdwg.mxu0
        %1400 = vmatpush.xpose.msra.mxu0 0.0
        %1401 = vmatpush.xpose.msra.mxu0 0.0
        %1402 = vmatpush.xpose.msra.mxu0 0.0
        %1403 = vmatpush.xpose.msra.mxu0 0.0
        %1404 = vmatpush.xpose.msra.mxu0 0.0
        %1405 = vmatpush.xpose.msra.mxu0 0.0
        %1406 = vmatpush.xpose.msra.mxu0 0.0
        %1407 = vmatpush.xpose.msra.mxu0 0.0
        %1408 = vmatpush.xpose.msra.mxu0 0.0
        %1409 = vmatpush.xpose.msra.mxu0 0.0
        %1410 = vmatpush.xpose.msra.mxu0 0.0
        %1411 = vmatpush.xpose.msra.mxu0 0.0
        %1412 = vmatpush.xpose.msra.mxu0 0.0
        %1413 = vmatpush.xpose.msra.mxu0 0.0
        %1414 = vmatpush.xpose.msra.mxu0 0.0
        %v1415 = vand.u32 %v1346, 4294901760
        %v1416 = vsub.f32 %v1346, %v1415
        %1417 = vmatpush.xpose.msra.mxu0 %v1416
        %v1418 = vand.u32 %v1344, 4294901760
        %v1419 = vsub.f32 %v1344, %v1418
        %1420 = vmatmul.f32.gmra.mxu0 %v1419
        %v1421 = vpop.f32.mrf.mxu0
        %v1422 = vadd.f32 %v1398, %v1421
        %1423 = vdwg.mxu0
        %1424 = vmatpush.xpose.msra.mxu0 0.0
        %1425 = vmatpush.xpose.msra.mxu0 0.0
        %1426 = vmatpush.xpose.msra.mxu0 0.0
        %1427 = vmatpush.xpose.msra.mxu0 0.0
        %1428 = vmatpush.xpose.msra.mxu0 0.0
        %1429 = vmatpush.xpose.msra.mxu0 0.0
        %1430 = vmatpush.xpose.msra.mxu0 0.0
        %1431 = vmatpush.xpose.msra.mxu0 0.0
        %1432 = vmatpush.xpose.msra.mxu0 0.0
        %1433 = vmatpush.xpose.msra.mxu0 0.0
        %1434 = vmatpush.xpose.msra.mxu0 0.0
        %1435 = vmatpush.xpose.msra.mxu0 0.0
        %1436 = vmatpush.xpose.msra.mxu0 0.0
        %1437 = vmatpush.xpose.msra.mxu0 0.0
        %1438 = vmatpush.xpose.msra.mxu0 0.0
        %v1439 = vand.u32 %v1346, 4294901760
        %1440 = vmatpush.xpose.msra.mxu0 %v1439
        %v1441 = vand.u32 %v1344, 4294901760
        %v1442 = vsub.f32 %v1344, %v1441
        %v1443 = vand.u32 %v1442, 4294901760
        %1444 = vmatmul.f32.gmra.mxu0 %v1443
        %v1445 = vpop.f32.mrf.mxu0
        %v1446 = vadd.f32 %v1422, %v1445
        %1447 = vdwg.mxu0
        %1448 = vmatpush.xpose.msra.mxu0 0.0
        %1449 = vmatpush.xpose.msra.mxu0 0.0
        %1450 = vmatpush.xpose.msra.mxu0 0.0
        %1451 = vmatpush.xpose.msra.mxu0 0.0
        %1452 = vmatpush.xpose.msra.mxu0 0.0
        %1453 = vmatpush.xpose.msra.mxu0 0.0
        %1454 = vmatpush.xpose.msra.mxu0 0.0
        %1455 = vmatpush.xpose.msra.mxu0 0.0
        %1456 = vmatpush.xpose.msra.mxu0 0.0
        %1457 = vmatpush.xpose.msra.mxu0 0.0
        %1458 = vmatpush.xpose.msra.mxu0 0.0
        %1459 = vmatpush.xpose.msra.mxu0 0.0
        %1460 = vmatpush.xpose.msra.mxu0 0.0
        %1461 = vmatpush.xpose.msra.mxu0 0.0
        %1462 = vmatpush.xpose.msra.mxu0 0.0
        %v1463 = vand.u32 %v1346, 4294901760
        %v1464 = vsub.f32 %v1346, %v1463
        %v1465 = vand.u32 %v1464, 4294901760
        %1466 = vmatpush.xpose.msra.mxu0 %v1465
        %v1467 = vand.u32 %v1344, 4294901760
        %1468 = vmatmul.f32.gmra.mxu0 %v1467
        %v1469 = vpop.f32.mrf.mxu0
        %v1470 = vadd.f32 %v1446, %v1469
        %1471 = vdwg.mxu0
        %1472 = vmatpush.xpose.msra.mxu0 0.0
        %1473 = vmatpush.xpose.msra.mxu0 0.0
        %1474 = vmatpush.xpose.msra.mxu0 0.0
        %1475 = vmatpush.xpose.msra.mxu0 0.0
        %1476 = vmatpush.xpose.msra.mxu0 0.0
        %1477 = vmatpush.xpose.msra.mxu0 0.0
        %1478 = vmatpush.xpose.msra.mxu0 0.0
        %1479 = vmatpush.xpose.msra.mxu0 0.0
        %1480 = vmatpush.xpose.msra.mxu0 0.0
        %1481 = vmatpush.xpose.msra.mxu0 0.0
        %1482 = vmatpush.xpose.msra.mxu0 0.0
        %1483 = vmatpush.xpose.msra.mxu0 0.0
        %1484 = vmatpush.xpose.msra.mxu0 0.0
        %1485 = vmatpush.xpose.msra.mxu0 0.0
        %1486 = vmatpush.xpose.msra.mxu0 0.0
        %v1487 = vand.u32 %v1346, 4294901760
        %1488 = vmatpush.xpose.msra.mxu0 %v1487
        %v1489 = vand.u32 %v1344, 4294901760
        %1490 = vmatmul.f32.gmra.mxu0 %v1489
        %v1491 = vpop.f32.mrf.mxu0
        %v1492 = vadd.f32 %v1470, %v1491
        %1493 = vdwg.mxu0
        %v1494 = vsel %vm833, %v1492, -inf
        %1495 = vmax.xlane.f32.xlu0 %v1494
        %v1496 = vpop.xlane.xlu0 %1495
        %v1497 = vsub.f32 %v1492, %v1496
        %v1498 = vmul.f32 %v1497, 1.442695
        %v1499 = vpow.pop %v1498
        %v1500 = vsel %vm833, %v1499, 0.0
        %1501 = vadd.xlane.f32.xlu0 %v1500
        %v1502 = vpop.xlane.xlu0 %1501
        %v1503 = vrcp.pop %v1502
        %v1504 = vmul.f32 %v1502, %v1503
        %v1505 = vsub.f32 1.0, %v1504
        %v1506 = vmul.f32 %v1503, %v1505
        %v1507 = vadd.f32 %v1503, %v1506
        %vm1508 = vweird.f32 %v1502
        %vm1509 = vweird.f32 %v1503
        %vm1510 = vmor %vm1508, %vm1509
        %v1511 = vsel %vm1510, %v1503, %v1507
        %v1512 = vand.u32 2147483647, %v1502
        %vm1513 = vcmp.eq.f32.partialorder %v1512, 8.507059e+37
        %v1514 = vand.u32 %v1502, 2147483648
        %v1515 = vor.u32 1.1754944e-38, %v1514
        %v1516 = vsel %vm1513, %v1515, %v1511
        %v1517 = vmul.f32 %v1499, %v1516
        %v1519 = vrot.slane %v677, 1
        %v1521 = vsel %vm860, %v1517, 0
        %v1523 = vsel %vm864, %v1519, 0
        %1525 = vmatpush.msra.mxu0 0.0
        %1526 = vmatpush.msra.mxu0 0.0
        %1527 = vmatpush.msra.mxu0 0.0
        %1528 = vmatpush.msra.mxu0 0.0
        %1529 = vmatpush.msra.mxu0 0.0
        %1530 = vmatpush.msra.mxu0 0.0
        %1531 = vmatpush.msra.mxu0 0.0
        %1532 = vmatpush.msra.mxu0 0.0
        %1533 = vmatpush.msra.mxu0 0.0
        %1534 = vmatpush.msra.mxu0 0.0
        %1535 = vmatpush.msra.mxu0 0.0
        %1536 = vmatpush.msra.mxu0 0.0
        %1537 = vmatpush.msra.mxu0 0.0
        %1538 = vmatpush.msra.mxu0 0.0
        %1539 = vmatpush.msra.mxu0 0.0
        %v1540 = vand.u32 %v1523, 4294901760
        %1541 = vmatpush.msra.mxu0 %v1540
        %v1542 = vand.u32 %v1521, 4294901760
        %v1543 = vsub.f32 %v1521, %v1542
        %v1544 = vand.u32 %v1543, 4294901760
        %v1545 = vsub.f32 %v1543, %v1544
        %v1546 = vand.u32 %v1545, 4294901760
        %1547 = vmatmul.f32.gmra.mxu0 %v1546
        %v1548 = vpop.f32.mrf.mxu0
        %v1549 = vadd.f32 0.0, %v1548
        %1550 = vdwg.mxu0
        %1551 = vmatpush.msra.mxu0 0.0
        %1552 = vmatpush.msra.mxu0 0.0
        %1553 = vmatpush.msra.mxu0 0.0
        %1554 = vmatpush.msra.mxu0 0.0
        %1555 = vmatpush.msra.mxu0 0.0
        %1556 = vmatpush.msra.mxu0 0.0
        %1557 = vmatpush.msra.mxu0 0.0
        %1558 = vmatpush.msra.mxu0 0.0
        %1559 = vmatpush.msra.mxu0 0.0
        %1560 = vmatpush.msra.mxu0 0.0
        %1561 = vmatpush.msra.mxu0 0.0
        %1562 = vmatpush.msra.mxu0 0.0
        %1563 = vmatpush.msra.mxu0 0.0
        %1564 = vmatpush.msra.mxu0 0.0
        %1565 = vmatpush.msra.mxu0 0.0
        %v1566 = vand.u32 %v1523, 4294901760
        %v1567 = vsub.f32 %v1523, %v1566
        %v1568 = vand.u32 %v1567, 4294901760
        %v1569 = vsub.f32 %v1567, %v1568
        %v1570 = vand.u32 %v1569, 4294901760
        %1571 = vmatpush.msra.mxu0 %v1570
        %v1572 = vand.u32 %v1521, 4294901760
        %1573 = vmatmul.f32.gmra.mxu0 %v1572
        %v1574 = vpop.f32.mrf.mxu0
        %v1575 = vadd.f32 %v1549, %v1574
        %1576 = vdwg.mxu0
        %1577 = vmatpush.msra.mxu0 0.0
        %1578 = vmatpush.msra.mxu0 0.0
        %1579 = vmatpush.msra.mxu0 0.0
        %1580 = vmatpush.msra.mxu0 0.0
        %1581 = vmatpush.msra.mxu0 0.0
        %1582 = vmatpush.msra.mxu0 0.0
        %1583 = vmatpush.msra.mxu0 0.0
        %1584 = vmatpush.msra.mxu0 0.0
        %1585 = vmatpush.msra.mxu0 0.0
        %1586 = vmatpush.msra.mxu0 0.0
        %1587 = vmatpush.msra.mxu0 0.0
        %1588 = vmatpush.msra.mxu0 0.0
        %1589 = vmatpush.msra.mxu0 0.0
        %1590 = vmatpush.msra.mxu0 0.0
        %1591 = vmatpush.msra.mxu0 0.0
        %v1592 = vand.u32 %v1523, 4294901760
        %v1593 = vsub.f32 %v1523, %v1592
        %1594 = vmatpush.msra.mxu0 %v1593
        %v1595 = vand.u32 %v1521, 4294901760
        %v1596 = vsub.f32 %v1521, %v1595
        %1597 = vmatmul.f32.gmra.mxu0 %v1596
        %v1598 = vpop.f32.mrf.mxu0
        %v1599 = vadd.f32 %v1575, %v1598
        %1600 = vdwg.mxu0
        %1601 = vmatpush.msra.mxu0 0.0
        %1602 = vmatpush.msra.mxu0 0.0
        %1603 = vmatpush.msra.mxu0 0.0
        %1604 = vmatpush.msra.mxu0 0.0
        %1605 = vmatpush.msra.mxu0 0.0
        %1606 = vmatpush.msra.mxu0 0.0
        %1607 = vmatpush.msra.mxu0 0.0
        %1608 = vmatpush.msra.mxu0 0.0
        %1609 = vmatpush.msra.mxu0 0.0
        %1610 = vmatpush.msra.mxu0 0.0
        %1611 = vmatpush.msra.mxu0 0.0
        %1612 = vmatpush.msra.mxu0 0.0
        %1613 = vmatpush.msra.mxu0 0.0
        %1614 = vmatpush.msra.mxu0 0.0
        %1615 = vmatpush.msra.mxu0 0.0
        %v1616 = vand.u32 %v1523, 4294901760
        %1617 = vmatpush.msra.mxu0 %v1616
        %v1618 = vand.u32 %v1521, 4294901760
        %v1619 = vsub.f32 %v1521, %v1618
        %v1620 = vand.u32 %v1619, 4294901760
        %1621 = vmatmul.f32.gmra.mxu0 %v1620
        %v1622 = vpop.f32.mrf.mxu0
        %v1623 = vadd.f32 %v1599, %v1622
        %1624 = vdwg.mxu0
        %1625 = vmatpush.msra.mxu0 0.0
        %1626 = vmatpush.msra.mxu0 0.0
        %1627 = vmatpush.msra.mxu0 0.0
        %1628 = vmatpush.msra.mxu0 0.0
        %1629 = vmatpush.msra.mxu0 0.0
        %1630 = vmatpush.msra.mxu0 0.0
        %1631 = vmatpush.msra.mxu0 0.0
        %1632 = vmatpush.msra.mxu0 0.0
        %1633 = vmatpush.msra.mxu0 0.0
        %1634 = vmatpush.msra.mxu0 0.0
        %1635 = vmatpush.msra.mxu0 0.0
        %1636 = vmatpush.msra.mxu0 0.0
        %1637 = vmatpush.msra.mxu0 0.0
        %1638 = vmatpush.msra.mxu0 0.0
        %1639 = vmatpush.msra.mxu0 0.0
        %v1640 = vand.u32 %v1523, 4294901760
        %v1641 = vsub.f32 %v1523, %v1640
        %v1642 = vand.u32 %v1641, 4294901760
        %1643 = vmatpush.msra.mxu0 %v1642
        %v1644 = vand.u32 %v1521, 4294901760
        %1645 = vmatmul.f32.gmra.mxu0 %v1644
        %v1646 = vpop.f32.mrf.mxu0
        %v1647 = vadd.f32 %v1623, %v1646
        %1648 = vdwg.mxu0
        %1649 = vmatpush.msra.mxu0 0.0
        %1650 = vmatpush.msra.mxu0 0.0
        %1651 = vmatpush.msra.mxu0 0.0
        %1652 = vmatpush.msra.mxu0 0.0
        %1653 = vmatpush.msra.mxu0 0.0
        %1654 = vmatpush.msra.mxu0 0.0
        %1655 = vmatpush.msra.mxu0 0.0
        %1656 = vmatpush.msra.mxu0 0.0
        %1657 = vmatpush.msra.mxu0 0.0
        %1658 = vmatpush.msra.mxu0 0.0
        %1659 = vmatpush.msra.mxu0 0.0
        %1660 = vmatpush.msra.mxu0 0.0
        %1661 = vmatpush.msra.mxu0 0.0
        %1662 = vmatpush.msra.mxu0 0.0
        %1663 = vmatpush.msra.mxu0 0.0
        %v1664 = vand.u32 %v1523, 4294901760
        %1665 = vmatpush.msra.mxu0 %v1664
        %v1666 = vand.u32 %v1521, 4294901760
        %1667 = vmatmul.f32.gmra.mxu0 %v1666
        %v1668 = vpop.f32.mrf.mxu0
        %v1669 = vadd.f32 %v1647, %v1668
        %1670 = vdwg.mxu0
        %v1671 = vadd.f32 %v1342, %v1669
        %vm1672 = vcmask 253952
        %1673 = vst.msk [vmem:[%s243] sm:$0x1] %vm1672, %v1671
        %s1674 = sand.u32 %s104, 1
        %s1675 = scalar_lea.sflag [#allocation4], %s1674
        %s1676 = sand.u32 %s104, 1
        %s1677 = scalar_lea.vmem [#allocation8], %s1676
        // Predicated region
        $region45: #{tpu_custom_call.1} parent=31 // pred_check
          %p1678 = pneg %p114
        $region46: #{tpu_custom_call.1} parent=31 // pred_check_branch
          %1680 = sbr.rel (%p1678) target = $region48
        $region47: #{tpu_custom_call.1} parent=31 // pred_region
          %1682 = vsyncadd %s1675, 0
          %s1683 = scalar_lea.hbm %s3, %s23
          %s1685 = sshll.u32 %s1677, 4
          %s1686 = int_to_ptr.vmem [resolvable:$true] %s1685
          %s1687 = sshll.u32 %s1683, 4
          %s1688 = int_to_ptr.hbm [resolvable:$true] %s1687
          %1690 = dma.vmem_to_hbm [thread:$0]  %s1686, 16, %s1688, %s1675
        $region48: #{tpu_custom_call.1} parent=31 // pred_fallthru
          _
      $region32: #{tpu_custom_call.1} parent=5 // pred_fallthru
        _
      %p1691 = scmp.le.s32.totalorder 2, %s18
      // Predicated region
      $region49: #{tpu_custom_call.1} parent=5 // pred_check
        %p1692 = pneg %p1691
      $region50: #{tpu_custom_call.1} parent=5 // pred_check_branch
        %1694 = sbr.rel (%p1692) target = $region52
      $region51: #{tpu_custom_call.1} parent=5 // pred_region
        %s1695 = ssub.s32 %s18, 2
        // Predicated region
        $region53: #{tpu_custom_call.1} parent=51 // pred_check
          %p1696 = pneg %p120
        $region54: #{tpu_custom_call.1} parent=51 // pred_check_branch
          %1698 = sbr.rel (%p1696) target = $region56
        $region55: #{tpu_custom_call.1} parent=51 // pred_region
          %s1699 = sand.u32 %s105, 1
          %s1700 = scalar_lea.sflag [#allocation4], %s1699
          %s1701 = sand.u32 %s105, 1
          %s1702 = scalar_lea.vmem [#allocation8], %s1701
          %1704 = dma.done %s1700, 16
        $region56: #{tpu_custom_call.1} parent=51 // pred_fallthru
          _
      $region52: #{tpu_custom_call.1} parent=5 // pred_fallthru
        _
    $region6: #{tpu_custom_call.1} parent=1 // loop_footer
      %s22 = sadd.s32 1, %s18
    $region7: #{tpu_custom_call.1} parent=1 // loop_footer_branch
      %17 = sbr.rel target = $region3
    $region8: #{tpu_custom_call.1} parent=1 // loop_exit
      _
    %1705 = vsyncpa [#allocation3], 1
    %s1706 = scalar_lea.sflag [#allocation3], 1
    %1707 = vsyncpa %s1706, 1
    %1708 = vsyncpa [#allocation6], 1
    %s1709 = scalar_lea.sflag [#allocation6], 1
    %1710 = vsyncpa %s1709, 1
    %1711 = vsyncpa [#allocation4], 1
    %s1712 = scalar_lea.sflag [#allocation4], 1
    %1713 = vsyncpa %s1712, 1

</llo_original>
